<compile_context>
chip_gen: v7x
topology: tpu7x:2x2x1
jax: 0.10.0
libtpu: 0.0.40
codegen_flags: <defaults>
</compile_context>

<pallas_src>
import jax
import jax.numpy as jnp
import numpy as np
from jax.experimental import pallas as pl
from jax.experimental.pallas import tpu as pltpu

INPUT_DIM = 32
HIDDEN_DIM = 24
OUTPUT_DIM = 12
ENC_HIDDEN, ENC_PAD = 240, 256
DEC_HIDDEN, DEC_PAD = 120, 128


def dlsage_kernel(
    xT_ref, aT_ref, invdegT_ref,
    ew1_ref, eb1_ref, ew2_ref, eb2_ref,
    sw_ref, sb_ref,
    dw1_ref, db1_ref, dw2_ref, db2_ref,
    oT_ref,
):
    f32 = jnp.float32
    bf16 = jnp.bfloat16

    xT = xT_ref[...]                                 # [32, N]  f32
    # int8 -> f32 -> bf16 in-register (storage stays 1 B/elem; counts are exact).
    aT = aT_ref[...].astype(f32).astype(bf16)        # [N, N]   bf16 (exact 0/1)
    inv_deg = invdegT_ref[...]                       # [1, N]   f32, 0 for isolated nodes

    # ---- encoder: Linear(32,240) + ReLU + Linear(240,24) + ReLU (f32, padded 240->256) ----
    h = jnp.dot(ew1_ref[...], xT, preferred_element_type=f32) + eb1_ref[...]   # [256, N]
    h = jnp.maximum(h, 0.0)
    h = jnp.dot(ew2_ref[...], h, preferred_element_type=f32) + eb2_ref[...]    # [24, N]
    h = jnp.maximum(h, 0.0)

    # ---- 3x SAGEConv(mean), ReLU after the first two ----
    # aggT = inv_deg * (hT_bf16 @ AT_bf16): bf16 MXU matmul with lane-dense [24,N]
    # output, f32 accumulate, f32 VPU per-lane scale.
    # lin_l/lin_r fused: [aggT ; hT] ([48,N], sublane concat) x stacked [24,48] weight.
    for l in range(3):
        agg = inv_deg * jnp.dot(h.astype(bf16), aT, preferred_element_type=f32)  # [24, N]
        hc = jnp.concatenate([agg, h], axis=0)                                   # [48, N]
        h = jnp.dot(sw_ref[l], hc, preferred_element_type=f32) + sb_ref[l]       # [24, N]
        if l < 2:
            h = jnp.maximum(h, 0.0)

    # ---- decoder: Linear(24,120) + ReLU + Linear(120,12) (padded 120->128) ----
    h = jnp.dot(dw1_ref[...], h, preferred_element_type=f32) + db1_ref[...]      # [128, N]
    h = jnp.maximum(h, 0.0)
    oT_ref[...] = jnp.dot(dw2_ref[...], h, preferred_element_type=f32) + db2_ref[...]  # [12, N]


def _pad_rows(w, rows):
    return jnp.zeros((rows, w.shape[1]), w.dtype).at[: w.shape[0]].set(w)


def _pad_cols(w, cols):
    return jnp.zeros((w.shape[0], cols), w.dtype).at[:, : w.shape[1]].set(w)


def _vmem_limit_bytes():
    # Re-derive per chip: v7x has 64 MiB/TC of VMEM, v5e/v6e have 128 MiB.
    try:
        cap = pltpu.get_tpu_info().vmem_capacity_bytes
        return min(int(cap * 3 // 4), 100 * 1024 * 1024)
    except Exception:
        return 48 * 1024 * 1024


def dlsage_forward(x, edge_index, params):
    n = x.shape[0]
    f32 = jnp.float32

    # Glue (plain JAX, one-time): transposed unnormalized adjacency + inverse in-degree.
    # AT[j, i] = #edges src=j -> dst=i.  Counts must be <= 127 for exact int8
    # (fine for simple graphs; assert in caller for dense multigraphs).
    src, dst = edge_index[0], edge_index[1]
    adjT = jnp.zeros((n, n), f32).at[src, dst].add(1.0)
    deg = jnp.sum(adjT, axis=0, keepdims=True)                        # [1, N] in-degree
    inv_deg = jnp.where(deg > 0.0, 1.0 / jnp.maximum(deg, 1.0), 0.0)  # [1, N] f32
    aT = adjT.astype(jnp.int8)                                        # [N, N] 1 B/elem

    # Weight packing / padding for the feature-major kernel (one-time glue).
    ew1T = _pad_rows(params["ew1"].T, ENC_PAD)        # [256, 32]
    eb1T = _pad_rows(params["eb1"].T, ENC_PAD)        # [256, 1]
    ew2T = _pad_cols(params["ew2"].T, ENC_PAD)        # [24, 256]
    eb2T = params["eb2"].T                            # [24, 1]
    swT = jnp.stack([                                 # [3, 24, 48]  = [Wl^T | Wr^T]
        jnp.concatenate([params[f"s{i}l"], params[f"s{i}r"]], axis=0).T
        for i in (1, 2, 3)
    ])
    sbT = jnp.stack([params[f"s{i}b"].T for i in (1, 2, 3)])          # [3, 24, 1]
    dw1T = _pad_rows(params["dw1"].T, DEC_PAD)        # [128, 24]
    db1T = _pad_rows(params["db1"].T, DEC_PAD)        # [128, 1]
    dw2T = _pad_cols(params["dw2"].T, DEC_PAD)        # [12, 128]
    db2T = params["db2"].T                            # [12, 1]

    args = (x.T, aT, inv_deg,
            ew1T, eb1T, ew2T, eb2T,
            swT, sbT,
            dw1T, db1T, dw2T, db2T)

    # Gridless call: every operand is a single VMEM-resident buffer (no pipeline,
    # hence no dead second buffer for the resident N x N adjacency).
    vmem_spec = pl.BlockSpec(memory_space=pltpu.MemorySpace.VMEM)

    oT = pl.pallas_call(
        dlsage_kernel,
        out_shape=jax.ShapeDtypeStruct((OUTPUT_DIM, n), f32),
        in_specs=[vmem_spec] * len(args),
        out_specs=vmem_spec,
        compiler_params=pltpu.CompilerParams(
            vmem_limit_bytes=_vmem_limit_bytes()),
    )(*args)

    return oT.T                                        # [N, 12]


def init_params(key):
    def lin(key, fan_in, fan_out):
        kw, kb = jax.random.split(key)
        bound = 1.0 / np.sqrt(fan_in)
        w = jax.random.uniform(kw, (fan_in, fan_out), jnp.float32, -bound, bound)
        b = jax.random.uniform(kb, (1, fan_out), jnp.float32, -bound, bound)
        return w, b

    keys = jax.random.split(key, 10)
    p = {}
    p["ew1"], p["eb1"] = lin(keys[0], INPUT_DIM, ENC_HIDDEN)
    p["ew2"], p["eb2"] = lin(keys[1], ENC_HIDDEN, HIDDEN_DIM)
    # SAGEConv l: lin_l (neighbor path, with bias), lin_r (root path, no bias)
    p["s1l"], p["s1b"] = lin(keys[2], HIDDEN_DIM, HIDDEN_DIM)
    p["s1r"], _ = lin(keys[3], HIDDEN_DIM, HIDDEN_DIM)
    p["s2l"], p["s2b"] = lin(keys[4], HIDDEN_DIM, HIDDEN_DIM)
    p["s2r"], _ = lin(keys[5], HIDDEN_DIM, HIDDEN_DIM)
    p["s3l"], p["s3b"] = lin(keys[6], HIDDEN_DIM, HIDDEN_DIM)
    p["s3r"], _ = lin(keys[7], HIDDEN_DIM, HIDDEN_DIM)
    p["dw1"], p["db1"] = lin(keys[8], HIDDEN_DIM, DEC_HIDDEN)
    p["dw2"], p["db2"] = lin(keys[9], DEC_HIDDEN, OUTPUT_DIM)
    return p


def reference_forward(x, edge_index, params):
    # Pure-f32 node-major semantic reference (normalized dense mean aggregation).
    n = x.shape[0]
    src, dst = edge_index[0], edge_index[1]
    adj = jnp.zeros((n, n), jnp.float32).at[dst, src].add(1.0)
    deg = jnp.sum(adj, axis=1, keepdims=True)
    a = adj / jnp.maximum(deg, 1.0)

    h = jnp.maximum(x @ params["ew1"] + params["eb1"], 0.0)
    h = jnp.maximum(h @ params["ew2"] + params["eb2"], 0.0)
    for l, relu in (("s1", True), ("s2", True), ("s3", False)):
        agg = a @ h
        h = agg @ params[l + "l"] + params[l + "b"] + h @ params[l + "r"]
        if relu:
            h = jnp.maximum(h, 0.0)
    h = jnp.maximum(h @ params["dw1"] + params["db1"], 0.0)
    return h @ params["dw2"] + params["db2"]


if __name__ == "__main__":
    key = jax.random.PRNGKey(0)
    k_param, k_x = jax.random.split(key)

    # IEEE case-118 sized graph (still tiny): bidirectional ring over nodes 0..116,
    # node 117 isolated (zero in-degree -> aggregation contributes only lin_l bias).
    n_nodes = 118
    x = jax.random.normal(k_x, (n_nodes, INPUT_DIM), jnp.float32)
    ring = np.arange(n_nodes - 1)
    nxt = (ring + 1) % (n_nodes - 1)
    src = np.concatenate([ring, nxt])
    dst = np.concatenate([nxt, ring])
    edge_index = jnp.asarray(np.stack([src, dst]), jnp.int32)

    params = init_params(k_param)

    out = dlsage_forward(x, edge_index, params)
    out = jax.block_until_ready(out)

    ref = reference_forward(x, edge_index, params)
    assert out.shape == (n_nodes, OUTPUT_DIM)
    # bf16 is used only for the aggregation matmul inputs (exact 0/1 adjacency,
    # h cast to bf16); tolerance loosened accordingly vs. the pure-f32 reference.
    assert np.allclose(np.asarray(out), np.asarray(ref), rtol=3e-2, atol=3e-2)

    print("KERNEL_OK")
</pallas_src>

<mosaic_0001>
module attributes {stable_mosaic.version = 11 : i64} {
  func.func @dlsage_kernel(%arg0: memref<32x118xf32, #tpu.memory_space<vmem>>, %arg1: memref<118x118xi8, #tpu.memory_space<vmem>>, %arg2: memref<1x118xf32, #tpu.memory_space<vmem>>, %arg3: memref<256x32xf32, #tpu.memory_space<vmem>>, %arg4: memref<256x1xf32, #tpu.memory_space<vmem>>, %arg5: memref<24x256xf32, #tpu.memory_space<vmem>>, %arg6: memref<24x1xf32, #tpu.memory_space<vmem>>, %arg7: memref<3x24x48xf32, #tpu.memory_space<vmem>>, %arg8: memref<3x24x1xf32, #tpu.memory_space<vmem>>, %arg9: memref<128x24xf32, #tpu.memory_space<vmem>>, %arg10: memref<128x1xf32, #tpu.memory_space<vmem>>, %arg11: memref<12x128xf32, #tpu.memory_space<vmem>>, %arg12: memref<12x1xf32, #tpu.memory_space<vmem>>, %arg13: memref<12x118xf32, #tpu.memory_space<vmem>>) attributes {dimension_semantics = [], scalar_prefetch = 0 : i64, scratch_operands = 0 : i64, tpu.core_type = #tpu.core_type<tc>} {
    %c0 = arith.constant 0 : index
    %c0_0 = arith.constant 0 : index
    %0 = vector.load %arg0[%c0, %c0_0] : memref<32x118xf32, #tpu.memory_space<vmem>>, vector<32x118xf32>
    %c0_1 = arith.constant 0 : index
    %c0_2 = arith.constant 0 : index
    %1 = vector.load %arg1[%c0_1, %c0_2] : memref<118x118xi8, #tpu.memory_space<vmem>>, vector<118x118xi8>
    %2 = arith.sitofp %1 : vector<118x118xi8> to vector<118x118xf32>
    %3 = arith.truncf %2 : vector<118x118xf32> to vector<118x118xbf16>
    %c0_3 = arith.constant 0 : index
    %c0_4 = arith.constant 0 : index
    %4 = vector.load %arg2[%c0_3, %c0_4] : memref<1x118xf32, #tpu.memory_space<vmem>>, vector<1x118xf32>
    %c0_5 = arith.constant 0 : index
    %c0_6 = arith.constant 0 : index
    %5 = vector.load %arg3[%c0_5, %c0_6] : memref<256x32xf32, #tpu.memory_space<vmem>>, vector<256x32xf32>
    %cst = arith.constant dense<0.000000e+00> : vector<256x118xf32>
    %6 = tpu.matmul %5, %0, %cst {dimension_numbers = #tpu.dot_dimension_numbers<[1], [0], [0], [1], [0, 0, 1, 1], [], []>} : vector<256x32xf32>, vector<32x118xf32>, vector<256x118xf32> -> vector<256x118xf32>
    %c0_7 = arith.constant 0 : index
    %c0_8 = arith.constant 0 : index
    %7 = vector.load %arg4[%c0_7, %c0_8] : memref<256x1xf32, #tpu.memory_space<vmem>>, vector<256x1xf32>
    %8 = vector.broadcast %7 : vector<256x1xf32> to vector<256x118xf32>
    %9 = arith.addf %6, %8 : vector<256x118xf32>
    %cst_9 = arith.constant 0.000000e+00 : f32
    %10 = vector.broadcast %cst_9 : f32 to vector<256x118xf32>
    %11 = arith.maximumf %9, %10 : vector<256x118xf32>
    %c0_10 = arith.constant 0 : index
    %c0_11 = arith.constant 0 : index
    %12 = vector.load %arg5[%c0_10, %c0_11] : memref<24x256xf32, #tpu.memory_space<vmem>>, vector<24x256xf32>
    %cst_12 = arith.constant dense<0.000000e+00> : vector<24x118xf32>
    %13 = tpu.matmul %12, %11, %cst_12 {dimension_numbers = #tpu.dot_dimension_numbers<[1], [0], [0], [1], [0, 0, 1, 1], [], []>} : vector<24x256xf32>, vector<256x118xf32>, vector<24x118xf32> -> vector<24x118xf32>
    %c0_13 = arith.constant 0 : index
    %c0_14 = arith.constant 0 : index
    %14 = vector.load %arg6[%c0_13, %c0_14] : memref<24x1xf32, #tpu.memory_space<vmem>>, vector<24x1xf32>
    %15 = vector.broadcast %14 : vector<24x1xf32> to vector<24x118xf32>
    %16 = arith.addf %13, %15 : vector<24x118xf32>
    %cst_15 = arith.constant 0.000000e+00 : f32
    %17 = vector.broadcast %cst_15 : f32 to vector<24x118xf32>
    %18 = arith.maximumf %16, %17 : vector<24x118xf32>
    %19 = arith.truncf %18 : vector<24x118xf32> to vector<24x118xbf16>
    %cst_16 = arith.constant dense<0.000000e+00> : vector<24x118xf32>
    %20 = tpu.matmul %19, %3, %cst_16 {dimension_numbers = #tpu.dot_dimension_numbers<[1], [0], [0], [1], [0, 0, 1, 1], [], []>} : vector<24x118xbf16>, vector<118x118xbf16>, vector<24x118xf32> -> vector<24x118xf32>
    %21 = vector.broadcast %4 : vector<1x118xf32> to vector<24x118xf32>
    %22 = arith.mulf %21, %20 : vector<24x118xf32>
    %23 = tpu.concatenate %22, %18 in 0 : vector<24x118xf32>, vector<24x118xf32> -> vector<48x118xf32>
    %c0_17 = arith.constant 0 : index
    %c0_18 = arith.constant 0 : index
    %c0_19 = arith.constant 0 : index
    %24 = vector.load %arg7[%c0_17, %c0_18, %c0_19] : memref<3x24x48xf32, #tpu.memory_space<vmem>>, vector<1x24x48xf32>
    %25 = vector.shape_cast %24 : vector<1x24x48xf32> to vector<24x48xf32>
    %cst_20 = arith.constant dense<0.000000e+00> : vector<24x118xf32>
    %26 = tpu.matmul %25, %23, %cst_20 {dimension_numbers = #tpu.dot_dimension_numbers<[1], [0], [0], [1], [0, 0, 1, 1], [], []>} : vector<24x48xf32>, vector<48x118xf32>, vector<24x118xf32> -> vector<24x118xf32>
    %c0_21 = arith.constant 0 : index
    %c0_22 = arith.constant 0 : index
    %c0_23 = arith.constant 0 : index
    %27 = vector.load %arg8[%c0_21, %c0_22, %c0_23] : memref<3x24x1xf32, #tpu.memory_space<vmem>>, vector<1x24x1xf32>
    %28 = vector.shape_cast %27 : vector<1x24x1xf32> to vector<24x1xf32>
    %29 = vector.broadcast %28 : vector<24x1xf32> to vector<24x118xf32>
    %30 = arith.addf %26, %29 : vector<24x118xf32>
    %cst_24 = arith.constant 0.000000e+00 : f32
    %31 = vector.broadcast %cst_24 : f32 to vector<24x118xf32>
    %32 = arith.maximumf %30, %31 : vector<24x118xf32>
    %33 = arith.truncf %32 : vector<24x118xf32> to vector<24x118xbf16>
    %cst_25 = arith.constant dense<0.000000e+00> : vector<24x118xf32>
    %34 = tpu.matmul %33, %3, %cst_25 {dimension_numbers = #tpu.dot_dimension_numbers<[1], [0], [0], [1], [0, 0, 1, 1], [], []>} : vector<24x118xbf16>, vector<118x118xbf16>, vector<24x118xf32> -> vector<24x118xf32>
    %35 = vector.broadcast %4 : vector<1x118xf32> to vector<24x118xf32>
    %36 = arith.mulf %35, %34 : vector<24x118xf32>
    %37 = tpu.concatenate %36, %32 in 0 : vector<24x118xf32>, vector<24x118xf32> -> vector<48x118xf32>
    %c1 = arith.constant 1 : index
    %c0_26 = arith.constant 0 : index
    %c0_27 = arith.constant 0 : index
    %38 = vector.load %arg7[%c1, %c0_26, %c0_27] : memref<3x24x48xf32, #tpu.memory_space<vmem>>, vector<1x24x48xf32>
    %39 = vector.shape_cast %38 : vector<1x24x48xf32> to vector<24x48xf32>
    %cst_28 = arith.constant dense<0.000000e+00> : vector<24x118xf32>
    %40 = tpu.matmul %39, %37, %cst_28 {dimension_numbers = #tpu.dot_dimension_numbers<[1], [0], [0], [1], [0, 0, 1, 1], [], []>} : vector<24x48xf32>, vector<48x118xf32>, vector<24x118xf32> -> vector<24x118xf32>
    %c1_29 = arith.constant 1 : index
    %c0_30 = arith.constant 0 : index
    %c0_31 = arith.constant 0 : index
    %41 = vector.load %arg8[%c1_29, %c0_30, %c0_31] : memref<3x24x1xf32, #tpu.memory_space<vmem>>, vector<1x24x1xf32>
    %42 = vector.shape_cast %41 : vector<1x24x1xf32> to vector<24x1xf32>
    %43 = vector.broadcast %42 : vector<24x1xf32> to vector<24x118xf32>
    %44 = arith.addf %40, %43 : vector<24x118xf32>
    %cst_32 = arith.constant 0.000000e+00 : f32
    %45 = vector.broadcast %cst_32 : f32 to vector<24x118xf32>
    %46 = arith.maximumf %44, %45 : vector<24x118xf32>
    %47 = arith.truncf %46 : vector<24x118xf32> to vector<24x118xbf16>
    %cst_33 = arith.constant dense<0.000000e+00> : vector<24x118xf32>
    %48 = tpu.matmul %47, %3, %cst_33 {dimension_numbers = #tpu.dot_dimension_numbers<[1], [0], [0], [1], [0, 0, 1, 1], [], []>} : vector<24x118xbf16>, vector<118x118xbf16>, vector<24x118xf32> -> vector<24x118xf32>
    %49 = vector.broadcast %4 : vector<1x118xf32> to vector<24x118xf32>
    %50 = arith.mulf %49, %48 : vector<24x118xf32>
    %51 = tpu.concatenate %50, %46 in 0 : vector<24x118xf32>, vector<24x118xf32> -> vector<48x118xf32>
    %c2 = arith.constant 2 : index
    %c0_34 = arith.constant 0 : index
    %c0_35 = arith.constant 0 : index
    %52 = vector.load %arg7[%c2, %c0_34, %c0_35] : memref<3x24x48xf32, #tpu.memory_space<vmem>>, vector<1x24x48xf32>
    %53 = vector.shape_cast %52 : vector<1x24x48xf32> to vector<24x48xf32>
    %cst_36 = arith.constant dense<0.000000e+00> : vector<24x118xf32>
    %54 = tpu.matmul %53, %51, %cst_36 {dimension_numbers = #tpu.dot_dimension_numbers<[1], [0], [0], [1], [0, 0, 1, 1], [], []>} : vector<24x48xf32>, vector<48x118xf32>, vector<24x118xf32> -> vector<24x118xf32>
    %c2_37 = arith.constant 2 : index
    %c0_38 = arith.constant 0 : index
    %c0_39 = arith.constant 0 : index
    %55 = vector.load %arg8[%c2_37, %c0_38, %c0_39] : memref<3x24x1xf32, #tpu.memory_space<vmem>>, vector<1x24x1xf32>
    %56 = vector.shape_cast %55 : vector<1x24x1xf32> to vector<24x1xf32>
    %57 = vector.broadcast %56 : vector<24x1xf32> to vector<24x118xf32>
    %58 = arith.addf %54, %57 : vector<24x118xf32>
    %c0_40 = arith.constant 0 : index
    %c0_41 = arith.constant 0 : index
    %59 = vector.load %arg9[%c0_40, %c0_41] : memref<128x24xf32, #tpu.memory_space<vmem>>, vector<128x24xf32>
    %cst_42 = arith.constant dense<0.000000e+00> : vector<128x118xf32>
    %60 = tpu.matmul %59, %58, %cst_42 {dimension_numbers = #tpu.dot_dimension_numbers<[1], [0], [0], [1], [0, 0, 1, 1], [], []>} : vector<128x24xf32>, vector<24x118xf32>, vector<128x118xf32> -> vector<128x118xf32>
    %c0_43 = arith.constant 0 : index
    %c0_44 = arith.constant 0 : index
    %61 = vector.load %arg10[%c0_43, %c0_44] : memref<128x1xf32, #tpu.memory_space<vmem>>, vector<128x1xf32>
    %62 = vector.broadcast %61 : vector<128x1xf32> to vector<128x118xf32>
    %63 = arith.addf %60, %62 : vector<128x118xf32>
    %cst_45 = arith.constant 0.000000e+00 : f32
    %64 = vector.broadcast %cst_45 : f32 to vector<128x118xf32>
    %65 = arith.maximumf %63, %64 : vector<128x118xf32>
    %c0_46 = arith.constant 0 : index
    %c0_47 = arith.constant 0 : index
    %66 = vector.load %arg11[%c0_46, %c0_47] : memref<12x128xf32, #tpu.memory_space<vmem>>, vector<12x128xf32>
    %cst_48 = arith.constant dense<0.000000e+00> : vector<12x118xf32>
    %67 = tpu.matmul %66, %65, %cst_48 {dimension_numbers = #tpu.dot_dimension_numbers<[1], [0], [0], [1], [0, 0, 1, 1], [], []>} : vector<12x128xf32>, vector<128x118xf32>, vector<12x118xf32> -> vector<12x118xf32>
    %c0_49 = arith.constant 0 : index
    %c0_50 = arith.constant 0 : index
    %68 = vector.load %arg12[%c0_49, %c0_50] : memref<12x1xf32, #tpu.memory_space<vmem>>, vector<12x1xf32>
    %69 = vector.broadcast %68 : vector<12x1xf32> to vector<12x118xf32>
    %70 = arith.addf %67, %69 : vector<12x118xf32>
    %c0_51 = arith.constant 0 : index
    %c0_52 = arith.constant 0 : index
    %71 = vector.load %arg13[%c0_51, %c0_52] : memref<12x118xf32, #tpu.memory_space<vmem>>, vector<12x118xf32>
    tpu.vector_store %arg13[%c0_51, %c0_52], %70 {strides = array<i32>} : memref<12x118xf32, #tpu.memory_space<vmem>>, vector<12x118xf32>,
    return
  }
}

</mosaic_0001>

<llo_original>
// kernel: tpu_custom_call.1
$region0: #{tpu_custom_call.1}
  #allocation0 [shape = 'u32[]', space=smem, size = 0x4, offset = 0x4, fixed_abs, tag = 'smem constant byte address 0x4 - core index']
  #allocation1 [shape = 'u32[144,128]{1,0:T(1,128)}', space=vmem, size = 0x12000, scoped, tag = 'internal scratch']
  %s0 = inlined_call_operand.vmem [shape: f32[32,118], index: 0, kind: input, shape index: {}]
  %s1 = inlined_call_operand.vmem [shape: s8[118,118], index: 1, kind: input, shape index: {}]
  %s2 = inlined_call_operand.vmem [shape: f32[1,118], index: 2, kind: input, shape index: {}]
  %s3 = inlined_call_operand.vmem [shape: f32[256,32], index: 3, kind: input, shape index: {}]
  %s4 = inlined_call_operand.vmem [shape: f32[256,1], index: 4, kind: input, shape index: {}]
  %s5 = inlined_call_operand.vmem [shape: f32[24,256], index: 5, kind: input, shape index: {}]
  %s6 = inlined_call_operand.vmem [shape: f32[24,1], index: 6, kind: input, shape index: {}]
  %s7 = inlined_call_operand.vmem [shape: f32[3,24,48], index: 7, kind: input, shape index: {}]
  %s8 = inlined_call_operand.vmem [shape: f32[3,24,1], index: 8, kind: input, shape index: {}]
  %s9 = inlined_call_operand.vmem [shape: f32[128,24], index: 9, kind: input, shape index: {}]
  %s10 = inlined_call_operand.vmem [shape: f32[128,1], index: 10, kind: input, shape index: {}]
  %s11 = inlined_call_operand.vmem [shape: f32[12,128], index: 11, kind: input, shape index: {}]
  %s12 = inlined_call_operand.vmem [shape: f32[12,1], index: 12, kind: input, shape index: {}]
  %s13 = inlined_call_operand.hbm [shape: f32[12,118], index: 13, kind: output, shape index: {}]
  %s14 = sld [smem:[#allocation0]]
  $region62: #{tpu_custom_call.1} parent=0
    _
  %s16 = ssub.s32 1, %s14
  %s17 = scalar_select 0, %s16, %s14
  $region1: #{tpu_custom_call.1} parent=0
    #allocation2 [shape = 'u8[8192]{0}', space=vmem, size = 0x2000, scoped, tag = 'output window, operand 0, single buffered']
    #allocation3 [shape = 's32[1]{0}', space=sflag, size = 0x4, scoped, tag = 'scoped memory for tpu_custom_call.1']
    %18 = vsyncpa [#allocation3], 0
    // Predicated region
    $region2: #{tpu_custom_call.1} parent=1 // pred_check
      _
    $region3: #{tpu_custom_call.1} parent=1 // pred_check_branch
      %20 = sbr.rel (0) target = $region5
    $region4: #{tpu_custom_call.1} parent=1 // pred_region
      _
    $region5: #{tpu_custom_call.1} parent=1 // pred_fallthru
      _
    // Predicated region
    $region6: #{tpu_custom_call.1} parent=1 // pred_check
      _
    $region7: #{tpu_custom_call.1} parent=1 // pred_check_branch
      %22 = sbr.rel (0) target = $region9
    $region8: #{tpu_custom_call.1} parent=1 // pred_region
      _
    $region9: #{tpu_custom_call.1} parent=1 // pred_fallthru
      _
    // Predicated region
    $region10: #{tpu_custom_call.1} parent=1 // pred_check
      _
    $region11: #{tpu_custom_call.1} parent=1 // pred_check_branch
      %24 = sbr.rel (0) target = $region13
    $region12: #{tpu_custom_call.1} parent=1 // pred_region
      _
    $region13: #{tpu_custom_call.1} parent=1 // pred_fallthru
      _
    // Predicated region
    $region14: #{tpu_custom_call.1} parent=1 // pred_check
      _
    $region15: #{tpu_custom_call.1} parent=1 // pred_check_branch
      %26 = sbr.rel (0) target = $region17
    $region16: #{tpu_custom_call.1} parent=1 // pred_region
      _
    $region17: #{tpu_custom_call.1} parent=1 // pred_fallthru
      _
    // Predicated region
    $region18: #{tpu_custom_call.1} parent=1 // pred_check
      _
    $region19: #{tpu_custom_call.1} parent=1 // pred_check_branch
      %28 = sbr.rel (0) target = $region21
    $region20: #{tpu_custom_call.1} parent=1 // pred_region
      _
    $region21: #{tpu_custom_call.1} parent=1 // pred_fallthru
      _
    // Predicated region
    $region22: #{tpu_custom_call.1} parent=1 // pred_check
      _
    $region23: #{tpu_custom_call.1} parent=1 // pred_check_branch
      %30 = sbr.rel (0) target = $region25
    $region24: #{tpu_custom_call.1} parent=1 // pred_region
      _
    $region25: #{tpu_custom_call.1} parent=1 // pred_fallthru
      _
    // Predicated region
    $region26: #{tpu_custom_call.1} parent=1 // pred_check
      _
    $region27: #{tpu_custom_call.1} parent=1 // pred_check_branch
      %32 = sbr.rel (0) target = $region29
    $region28: #{tpu_custom_call.1} parent=1 // pred_region
      _
    $region29: #{tpu_custom_call.1} parent=1 // pred_fallthru
      _
    // Predicated region
    $region30: #{tpu_custom_call.1} parent=1 // pred_check
      _
    $region31: #{tpu_custom_call.1} parent=1 // pred_check_branch
      %34 = sbr.rel (0) target = $region33
    $region32: #{tpu_custom_call.1} parent=1 // pred_region
      _
    $region33: #{tpu_custom_call.1} parent=1 // pred_fallthru
      _
    // Predicated region
    $region34: #{tpu_custom_call.1} parent=1 // pred_check
      _
    $region35: #{tpu_custom_call.1} parent=1 // pred_check_branch
      %36 = sbr.rel (0) target = $region37
    $region36: #{tpu_custom_call.1} parent=1 // pred_region
      _
    $region37: #{tpu_custom_call.1} parent=1 // pred_fallthru
      _
    // Predicated region
    $region38: #{tpu_custom_call.1} parent=1 // pred_check
      _
    $region39: #{tpu_custom_call.1} parent=1 // pred_check_branch
      %38 = sbr.rel (0) target = $region41
    $region40: #{tpu_custom_call.1} parent=1 // pred_region
      _
    $region41: #{tpu_custom_call.1} parent=1 // pred_fallthru
      _
    // Predicated region
    $region42: #{tpu_custom_call.1} parent=1 // pred_check
      _
    $region43: #{tpu_custom_call.1} parent=1 // pred_check_branch
      %40 = sbr.rel (0) target = $region45
    $region44: #{tpu_custom_call.1} parent=1 // pred_region
      _
    $region45: #{tpu_custom_call.1} parent=1 // pred_fallthru
      _
    // Predicated region
    $region46: #{tpu_custom_call.1} parent=1 // pred_check
      _
    $region47: #{tpu_custom_call.1} parent=1 // pred_check_branch
      %42 = sbr.rel (0) target = $region49
    $region48: #{tpu_custom_call.1} parent=1 // pred_region
      _
    $region49: #{tpu_custom_call.1} parent=1 // pred_fallthru
      _
    // Predicated region
    $region50: #{tpu_custom_call.1} parent=1 // pred_check
      _
    $region51: #{tpu_custom_call.1} parent=1 // pred_check_branch
      %44 = sbr.rel (0) target = $region53
    $region52: #{tpu_custom_call.1} parent=1 // pred_region
      _
    $region53: #{tpu_custom_call.1} parent=1 // pred_fallthru
      _
    %v46 = vld [vmem:[%s0] sm:$0xff]
    %v47 = vld [vmem:[%s0 + $0x8] sm:$0xff]
    %v48 = vld [vmem:[%s0 + $0x10] sm:$0xff]
    %v49 = vld [vmem:[%s0 + $0x18] sm:$0xff]
    %v50 = vld [vmem:[%s1] sm:$0x3]
    %v51 = vld [vmem:[%s1 + $0x2] sm:$0x3]
    %v52 = vld [vmem:[%s1 + $0x4] sm:$0x3]
    %v53 = vld [vmem:[%s1 + $0x6] sm:$0x3]
    %v54 = vld [vmem:[%s1 + $0x8] sm:$0x3]
    %v55 = vld [vmem:[%s1 + $0xa] sm:$0x3]
    %v56 = vld [vmem:[%s1 + $0xc] sm:$0x3]
    %v57 = vld [vmem:[%s1 + $0xe] sm:$0x3]
    %v58 = vld [vmem:[%s1 + $0x10] sm:$0x3]
    %v59 = vld [vmem:[%s1 + $0x12] sm:$0x3]
    %v60 = vld [vmem:[%s1 + $0x14] sm:$0x3]
    %v61 = vld [vmem:[%s1 + $0x16] sm:$0x3]
    %v62 = vld [vmem:[%s1 + $0x18] sm:$0x3]
    %v63 = vld [vmem:[%s1 + $0x1a] sm:$0x3]
    %v64 = vld [vmem:[%s1 + $0x1c] sm:$0x3]
    %v65 = vunpack.c.l.s8.bf16 %v50
    %v66 = vunpack.c.l.s8.bf16 %v51
    %v67 = vunpack.c.l.s8.bf16 %v52
    %v68 = vunpack.c.l.s8.bf16 %v53
    %v69 = vunpack.c.l.s8.bf16 %v54
    %v70 = vunpack.c.l.s8.bf16 %v55
    %v71 = vunpack.c.l.s8.bf16 %v56
    %v72 = vunpack.c.l.s8.bf16 %v57
    %v73 = vunpack.c.l.s8.bf16 %v58
    %v74 = vunpack.c.l.s8.bf16 %v59
    %v75 = vunpack.c.l.s8.bf16 %v60
    %v76 = vunpack.c.l.s8.bf16 %v61
    %v77 = vunpack.c.l.s8.bf16 %v62
    %v78 = vunpack.c.l.s8.bf16 %v63
    %v79 = vunpack.c.l.s8.bf16 %v64
    %v80 = vld [vmem:[%s2] sm:$0x1]
    %v81 = vld [vmem:[%s3] sm:$0xff]
    %v82 = vld [vmem:[%s3 + $0x8] sm:$0xff]
    %v83 = vld [vmem:[%s3 + $0x10] sm:$0xff]
    %v84 = vld [vmem:[%s3 + $0x18] sm:$0xff]
    %v85 = vld [vmem:[%s3 + $0x20] sm:$0xff]
    %v86 = vld [vmem:[%s3 + $0x28] sm:$0xff]
    %v87 = vld [vmem:[%s3 + $0x30] sm:$0xff]
    %v88 = vld [vmem:[%s3 + $0x38] sm:$0xff]
    %v89 = vld [vmem:[%s3 + $0x40] sm:$0xff]
    %v90 = vld [vmem:[%s3 + $0x48] sm:$0xff]
    %v91 = vld [vmem:[%s3 + $0x50] sm:$0xff]
    %v92 = vld [vmem:[%s3 + $0x58] sm:$0xff]
    %v93 = vld [vmem:[%s3 + $0x60] sm:$0xff]
    %v94 = vld [vmem:[%s3 + $0x68] sm:$0xff]
    %v95 = vld [vmem:[%s3 + $0x70] sm:$0xff]
    %v96 = vld [vmem:[%s3 + $0x78] sm:$0xff]
    %v97 = vld [vmem:[%s3 + $0x80] sm:$0xff]
    %v98 = vld [vmem:[%s3 + $0x88] sm:$0xff]
    %v99 = vld [vmem:[%s3 + $0x90] sm:$0xff]
    %v100 = vld [vmem:[%s3 + $0x98] sm:$0xff]
    %v101 = vld [vmem:[%s3 + $0xa0] sm:$0xff]
    %v102 = vld [vmem:[%s3 + $0xa8] sm:$0xff]
    %v103 = vld [vmem:[%s3 + $0xb0] sm:$0xff]
    %v104 = vld [vmem:[%s3 + $0xb8] sm:$0xff]
    %v105 = vld [vmem:[%s3 + $0xc0] sm:$0xff]
    %v106 = vld [vmem:[%s3 + $0xc8] sm:$0xff]
    %v107 = vld [vmem:[%s3 + $0xd0] sm:$0xff]
    %v108 = vld [vmem:[%s3 + $0xd8] sm:$0xff]
    %v109 = vld [vmem:[%s3 + $0xe0] sm:$0xff]
    %v110 = vld [vmem:[%s3 + $0xe8] sm:$0xff]
    %v111 = vld [vmem:[%s3 + $0xf0] sm:$0xff]
    %v112 = vld [vmem:[%s3 + $0xf8] sm:$0xff]
    %v113 = vld [vmem:[%s4] sm:$0xff]
    %v114 = vld [vmem:[%s4 + $0x8] sm:$0xff]
    %v115 = vld [vmem:[%s4 + $0x10] sm:$0xff]
    %v116 = vld [vmem:[%s4 + $0x18] sm:$0xff]
    %v117 = vld [vmem:[%s4 + $0x20] sm:$0xff]
    %v118 = vld [vmem:[%s4 + $0x28] sm:$0xff]
    %v119 = vld [vmem:[%s4 + $0x30] sm:$0xff]
    %v120 = vld [vmem:[%s4 + $0x38] sm:$0xff]
    %v121 = vld [vmem:[%s4 + $0x40] sm:$0xff]
    %v122 = vld [vmem:[%s4 + $0x48] sm:$0xff]
    %v123 = vld [vmem:[%s4 + $0x50] sm:$0xff]
    %v124 = vld [vmem:[%s4 + $0x58] sm:$0xff]
    %v125 = vld [vmem:[%s4 + $0x60] sm:$0xff]
    %v126 = vld [vmem:[%s4 + $0x68] sm:$0xff]
    %v127 = vld [vmem:[%s4 + $0x70] sm:$0xff]
    %v128 = vld [vmem:[%s4 + $0x78] sm:$0xff]
    %v129 = vld [vmem:[%s4 + $0x80] sm:$0xff]
    %v130 = vld [vmem:[%s4 + $0x88] sm:$0xff]
    %v131 = vld [vmem:[%s4 + $0x90] sm:$0xff]
    %v132 = vld [vmem:[%s4 + $0x98] sm:$0xff]
    %v133 = vld [vmem:[%s4 + $0xa0] sm:$0xff]
    %v134 = vld [vmem:[%s4 + $0xa8] sm:$0xff]
    %v135 = vld [vmem:[%s4 + $0xb0] sm:$0xff]
    %v136 = vld [vmem:[%s4 + $0xb8] sm:$0xff]
    %v137 = vld [vmem:[%s4 + $0xc0] sm:$0xff]
    %v138 = vld [vmem:[%s4 + $0xc8] sm:$0xff]
    %v139 = vld [vmem:[%s4 + $0xd0] sm:$0xff]
    %v140 = vld [vmem:[%s4 + $0xd8] sm:$0xff]
    %v141 = vld [vmem:[%s4 + $0xe0] sm:$0xff]
    %v142 = vld [vmem:[%s4 + $0xe8] sm:$0xff]
    %v143 = vld [vmem:[%s4 + $0xf0] sm:$0xff]
    %v144 = vld [vmem:[%s4 + $0xf8] sm:$0xff]
    %146 = vset.pattern.permute.xlu0 0
    %147 = vperm.xlu0 %146, %v113
    %v148 = vpop.permute.xlu0 %147
    %151 = vset.pattern.permute.xlu0 0
    %152 = vperm.xlu0 %151, %v114
    %v153 = vpop.permute.xlu0 %152
    %156 = vset.pattern.permute.xlu0 0
    %157 = vperm.xlu0 %156, %v115
    %v158 = vpop.permute.xlu0 %157
    %161 = vset.pattern.permute.xlu0 0
    %162 = vperm.xlu0 %161, %v116
    %v163 = vpop.permute.xlu0 %162
    %166 = vset.pattern.permute.xlu0 0
    %167 = vperm.xlu0 %166, %v117
    %v168 = vpop.permute.xlu0 %167
    %171 = vset.pattern.permute.xlu0 0
    %172 = vperm.xlu0 %171, %v118
    %v173 = vpop.permute.xlu0 %172
    %176 = vset.pattern.permute.xlu0 0
    %177 = vperm.xlu0 %176, %v119
    %v178 = vpop.permute.xlu0 %177
    %181 = vset.pattern.permute.xlu0 0
    %182 = vperm.xlu0 %181, %v120
    %v183 = vpop.permute.xlu0 %182
    %186 = vset.pattern.permute.xlu0 0
    %187 = vperm.xlu0 %186, %v121
    %v188 = vpop.permute.xlu0 %187
    %191 = vset.pattern.permute.xlu0 0
    %192 = vperm.xlu0 %191, %v122
    %v193 = vpop.permute.xlu0 %192
    %196 = vset.pattern.permute.xlu0 0
    %197 = vperm.xlu0 %196, %v123
    %v198 = vpop.permute.xlu0 %197
    %201 = vset.pattern.permute.xlu0 0
    %202 = vperm.xlu0 %201, %v124
    %v203 = vpop.permute.xlu0 %202
    %206 = vset.pattern.permute.xlu0 0
    %207 = vperm.xlu0 %206, %v125
    %v208 = vpop.permute.xlu0 %207
    %211 = vset.pattern.permute.xlu0 0
    %212 = vperm.xlu0 %211, %v126
    %v213 = vpop.permute.xlu0 %212
    %216 = vset.pattern.permute.xlu0 0
    %217 = vperm.xlu0 %216, %v127
    %v218 = vpop.permute.xlu0 %217
    %221 = vset.pattern.permute.xlu0 0
    %222 = vperm.xlu0 %221, %v128
    %v223 = vpop.permute.xlu0 %222
    %226 = vset.pattern.permute.xlu0 0
    %227 = vperm.xlu0 %226, %v129
    %v228 = vpop.permute.xlu0 %227
    %231 = vset.pattern.permute.xlu0 0
    %232 = vperm.xlu0 %231, %v130
    %v233 = vpop.permute.xlu0 %232
    %236 = vset.pattern.permute.xlu0 0
    %237 = vperm.xlu0 %236, %v131
    %v238 = vpop.permute.xlu0 %237
    %241 = vset.pattern.permute.xlu0 0
    %242 = vperm.xlu0 %241, %v132
    %v243 = vpop.permute.xlu0 %242
    %246 = vset.pattern.permute.xlu0 0
    %247 = vperm.xlu0 %246, %v133
    %v248 = vpop.permute.xlu0 %247
    %251 = vset.pattern.permute.xlu0 0
    %252 = vperm.xlu0 %251, %v134
    %v253 = vpop.permute.xlu0 %252
    %256 = vset.pattern.permute.xlu0 0
    %257 = vperm.xlu0 %256, %v135
    %v258 = vpop.permute.xlu0 %257
    %261 = vset.pattern.permute.xlu0 0
    %262 = vperm.xlu0 %261, %v136
    %v263 = vpop.permute.xlu0 %262
    %266 = vset.pattern.permute.xlu0 0
    %267 = vperm.xlu0 %266, %v137
    %v268 = vpop.permute.xlu0 %267
    %271 = vset.pattern.permute.xlu0 0
    %272 = vperm.xlu0 %271, %v138
    %v273 = vpop.permute.xlu0 %272
    %276 = vset.pattern.permute.xlu0 0
    %277 = vperm.xlu0 %276, %v139
    %v278 = vpop.permute.xlu0 %277
    %281 = vset.pattern.permute.xlu0 0
    %282 = vperm.xlu0 %281, %v140
    %v283 = vpop.permute.xlu0 %282
    %286 = vset.pattern.permute.xlu0 0
    %287 = vperm.xlu0 %286, %v141
    %v288 = vpop.permute.xlu0 %287
    %291 = vset.pattern.permute.xlu0 0
    %292 = vperm.xlu0 %291, %v142
    %v293 = vpop.permute.xlu0 %292
    %296 = vset.pattern.permute.xlu0 0
    %297 = vperm.xlu0 %296, %v143
    %v298 = vpop.permute.xlu0 %297
    %301 = vset.pattern.permute.xlu0 0
    %302 = vperm.xlu0 %301, %v144
    %v303 = vpop.permute.xlu0 %302
    %vm305 = vcmask 261120
    %v307 = vsel %vm305, %v81, 0
    %v310 = vsel %vm305, %v82, 0
    %v313 = vsel %vm305, %v83, 0
    %v316 = vsel %vm305, %v84, 0
    %v319 = vsel %vm305, %v85, 0
    %v322 = vsel %vm305, %v86, 0
    %v325 = vsel %vm305, %v87, 0
    %v328 = vsel %vm305, %v88, 0
    %v331 = vsel %vm305, %v89, 0
    %v334 = vsel %vm305, %v90, 0
    %v337 = vsel %vm305, %v91, 0
    %v340 = vsel %vm305, %v92, 0
    %v343 = vsel %vm305, %v93, 0
    %v346 = vsel %vm305, %v94, 0
    %v349 = vsel %vm305, %v95, 0
    %v352 = vsel %vm305, %v96, 0
    %v355 = vsel %vm305, %v97, 0
    %v358 = vsel %vm305, %v98, 0
    %v361 = vsel %vm305, %v99, 0
    %v364 = vsel %vm305, %v100, 0
    %v367 = vsel %vm305, %v101, 0
    %v370 = vsel %vm305, %v102, 0
    %v373 = vsel %vm305, %v103, 0
    %v376 = vsel %vm305, %v104, 0
    %v379 = vsel %vm305, %v105, 0
    %v382 = vsel %vm305, %v106, 0
    %v385 = vsel %vm305, %v107, 0
    %v388 = vsel %vm305, %v108, 0
    %v391 = vsel %vm305, %v109, 0
    %v394 = vsel %vm305, %v110, 0
    %v397 = vsel %vm305, %v111, 0
    %v400 = vsel %vm305, %v112, 0
    %402 = vmatprep.subr.mxu0 0.0
    %403 = vmatpush1.msra.mxu0 %v46
    %404 = vmatprep.subr.mxu0 0.0
    %405 = vmatpush1.msra.mxu0 %v47
    %406 = vmatprep.subr.mxu0 0.0
    %407 = vmatpush1.msra.mxu0 %v48
    %408 = vmatprep.subr.mxu0 0.0
    %409 = vmatpush1.msra.mxu0 %v49
    %410 = vmatprep.subr.mxu0 0.0
    %411 = vmatpush1.msra.mxu0 0.0
    %412 = vmatprep.subr.mxu0 0.0
    %413 = vmatpush1.msra.mxu0 0.0
    %414 = vmatprep.subr.mxu0 0.0
    %415 = vmatpush1.msra.mxu0 0.0
    %416 = vmatprep.subr.mxu0 0.0
    %417 = vmatpush1.msra.mxu0 0.0
    %418 = vmatprep.subr.mxu0 0.0
    %419 = vmatpush1.msra.mxu0 0.0
    %420 = vmatprep.subr.mxu0 0.0
    %421 = vmatpush1.msra.mxu0 0.0
    %422 = vmatprep.subr.mxu0 0.0
    %423 = vmatpush1.msra.mxu0 0.0
    %424 = vmatprep.subr.mxu0 0.0
    %425 = vmatpush1.msra.mxu0 0.0
    %426 = vmatprep.subr.mxu0 0.0
    %427 = vmatpush1.msra.mxu0 0.0
    %428 = vmatprep.subr.mxu0 0.0
    %429 = vmatpush1.msra.mxu0 0.0
    %430 = vmatprep.subr.mxu0 0.0
    %431 = vmatpush1.msra.mxu0 0.0
    %432 = vmatprep.subr.mxu0 0.0
    %433 = vmatpush1.msra.mxu0 0.0
    %434 = vmatprep.subr.mxu0 0.0
    %435 = vmatpush1.msra.mxu0 0.0
    %436 = vmatprep.subr.mxu0 0.0
    %437 = vmatpush1.msra.mxu0 0.0
    %438 = vmatprep.subr.mxu0 0.0
    %439 = vmatpush1.msra.mxu0 0.0
    %440 = vmatprep.subr.mxu0 0.0
    %441 = vmatpush1.msra.mxu0 0.0
    %442 = vmatprep.subr.mxu0 0.0
    %443 = vmatpush1.msra.mxu0 0.0
    %444 = vmatprep.subr.mxu0 0.0
    %445 = vmatpush1.msra.mxu0 0.0
    %446 = vmatprep.subr.mxu0 0.0
    %447 = vmatpush1.msra.mxu0 0.0
    %448 = vmatprep.subr.mxu0 0.0
    %449 = vmatpush1.msra.mxu0 0.0
    %450 = vmatprep.subr.mxu0 0.0
    %451 = vmatpush1.msra.mxu0 0.0
    %452 = vmatprep.subr.mxu0 0.0
    %453 = vmatpush1.msra.mxu0 0.0
    %454 = vmatprep.subr.mxu0 0.0
    %455 = vmatpush1.msra.mxu0 0.0
    %456 = vmatprep.subr.mxu0 0.0
    %457 = vmatpush1.msra.mxu0 0.0
    %458 = vmatprep.subr.mxu0 0.0
    %459 = vmatpush1.msra.mxu0 0.0
    %460 = vmatprep.subr.mxu0 0.0
    %461 = vmatpush1.msra.mxu0 0.0
    %462 = vmatprep.subr.mxu0 0.0
    %463 = vmatpush1.msra.mxu0 0.0
    %464 = vmatprep.subr.mxu0 0.0
    %465 = vmatpush1.msra.mxu0 0.0
    %466 = vmatprep.mubr.f32.mxu0 0.0
    %467 = vmatmul.mubr.f32.gmra.mrb[0].mxu0 %v307
    %v468 = vpop.f32.mrb[0].mxu0
    %v469 = vadd.f32 %v148, %v468
    %v470 = vpop.f32.mrb[0].mxu0
    %471 = vmatprep.mubr.f32.mxu0 0.0
    %472 = vmatmul.mubr.f32.gmra.mrb[0].mxu0 %v310
    %v473 = vpop.f32.mrb[0].mxu0
    %v474 = vadd.f32 %v153, %v473
    %v475 = vpop.f32.mrb[0].mxu0
    %476 = vmatprep.mubr.f32.mxu0 0.0
    %477 = vmatmul.mubr.f32.gmra.mrb[0].mxu0 %v313
    %v478 = vpop.f32.mrb[0].mxu0
    %v479 = vadd.f32 %v158, %v478
    %v480 = vpop.f32.mrb[0].mxu0
    %481 = vmatprep.mubr.f32.mxu0 0.0
    %482 = vmatmul.mubr.f32.gmra.mrb[0].mxu0 %v316
    %v483 = vpop.f32.mrb[0].mxu0
    %v484 = vadd.f32 %v163, %v483
    %v485 = vpop.f32.mrb[0].mxu0
    %486 = vmatprep.mubr.f32.mxu0 0.0
    %487 = vmatmul.mubr.f32.gmra.mrb[0].mxu0 %v319
    %v488 = vpop.f32.mrb[0].mxu0
    %v489 = vadd.f32 %v168, %v488
    %v490 = vpop.f32.mrb[0].mxu0
    %491 = vmatprep.mubr.f32.mxu0 0.0
    %492 = vmatmul.mubr.f32.gmra.mrb[0].mxu0 %v322
    %v493 = vpop.f32.mrb[0].mxu0
    %v494 = vadd.f32 %v173, %v493
    %v495 = vpop.f32.mrb[0].mxu0
    %496 = vmatprep.mubr.f32.mxu0 0.0
    %497 = vmatmul.mubr.f32.gmra.mrb[0].mxu0 %v325
    %v498 = vpop.f32.mrb[0].mxu0
    %v499 = vadd.f32 %v178, %v498
    %v500 = vpop.f32.mrb[0].mxu0
    %501 = vmatprep.mubr.f32.mxu0 0.0
    %502 = vmatmul.mubr.f32.gmra.mrb[0].mxu0 %v328
    %v503 = vpop.f32.mrb[0].mxu0
    %v504 = vadd.f32 %v183, %v503
    %v505 = vpop.f32.mrb[0].mxu0
    %506 = vmatprep.mubr.f32.mxu0 0.0
    %507 = vmatmul.mubr.f32.gmra.mrb[0].mxu0 %v331
    %v508 = vpop.f32.mrb[0].mxu0
    %v509 = vadd.f32 %v188, %v508
    %v510 = vpop.f32.mrb[0].mxu0
    %511 = vmatprep.mubr.f32.mxu0 0.0
    %512 = vmatmul.mubr.f32.gmra.mrb[0].mxu0 %v334
    %v513 = vpop.f32.mrb[0].mxu0
    %v514 = vadd.f32 %v193, %v513
    %v515 = vpop.f32.mrb[0].mxu0
    %516 = vmatprep.mubr.f32.mxu0 0.0
    %517 = vmatmul.mubr.f32.gmra.mrb[0].mxu0 %v337
    %v518 = vpop.f32.mrb[0].mxu0
    %v519 = vadd.f32 %v198, %v518
    %v520 = vpop.f32.mrb[0].mxu0
    %521 = vmatprep.mubr.f32.mxu0 0.0
    %522 = vmatmul.mubr.f32.gmra.mrb[0].mxu0 %v340
    %v523 = vpop.f32.mrb[0].mxu0
    %v524 = vadd.f32 %v203, %v523
    %v525 = vpop.f32.mrb[0].mxu0
    %526 = vmatprep.mubr.f32.mxu0 0.0
    %527 = vmatmul.mubr.f32.gmra.mrb[0].mxu0 %v343
    %v528 = vpop.f32.mrb[0].mxu0
    %v529 = vadd.f32 %v208, %v528
    %v530 = vpop.f32.mrb[0].mxu0
    %531 = vmatprep.mubr.f32.mxu0 0.0
    %532 = vmatmul.mubr.f32.gmra.mrb[0].mxu0 %v346
    %v533 = vpop.f32.mrb[0].mxu0
    %v534 = vadd.f32 %v213, %v533
    %v535 = vpop.f32.mrb[0].mxu0
    %536 = vmatprep.mubr.f32.mxu0 0.0
    %537 = vmatmul.mubr.f32.gmra.mrb[0].mxu0 %v349
    %v538 = vpop.f32.mrb[0].mxu0
    %v539 = vadd.f32 %v218, %v538
    %v540 = vpop.f32.mrb[0].mxu0
    %541 = vmatprep.mubr.f32.mxu0 0.0
    %542 = vmatmul.mubr.f32.gmra.mrb[0].mxu0 %v352
    %v543 = vpop.f32.mrb[0].mxu0
    %v544 = vadd.f32 %v223, %v543
    %v545 = vpop.f32.mrb[0].mxu0
    %546 = vmatprep.mubr.f32.mxu0 0.0
    %547 = vmatmul.mubr.f32.gmra.mrb[0].mxu0 %v355
    %v548 = vpop.f32.mrb[0].mxu0
    %v549 = vadd.f32 %v228, %v548
    %v550 = vpop.f32.mrb[0].mxu0
    %551 = vmatprep.mubr.f32.mxu0 0.0
    %552 = vmatmul.mubr.f32.gmra.mrb[0].mxu0 %v358
    %v553 = vpop.f32.mrb[0].mxu0
    %v554 = vadd.f32 %v233, %v553
    %v555 = vpop.f32.mrb[0].mxu0
    %556 = vmatprep.mubr.f32.mxu0 0.0
    %557 = vmatmul.mubr.f32.gmra.mrb[0].mxu0 %v361
    %v558 = vpop.f32.mrb[0].mxu0
    %v559 = vadd.f32 %v238, %v558
    %v560 = vpop.f32.mrb[0].mxu0
    %561 = vmatprep.mubr.f32.mxu0 0.0
    %562 = vmatmul.mubr.f32.gmra.mrb[0].mxu0 %v364
    %v563 = vpop.f32.mrb[0].mxu0
    %v564 = vadd.f32 %v243, %v563
    %v565 = vpop.f32.mrb[0].mxu0
    %566 = vmatprep.mubr.f32.mxu0 0.0
    %567 = vmatmul.mubr.f32.gmra.mrb[0].mxu0 %v367
    %v568 = vpop.f32.mrb[0].mxu0
    %v569 = vadd.f32 %v248, %v568
    %v570 = vpop.f32.mrb[0].mxu0
    %571 = vmatprep.mubr.f32.mxu0 0.0
    %572 = vmatmul.mubr.f32.gmra.mrb[0].mxu0 %v370
    %v573 = vpop.f32.mrb[0].mxu0
    %v574 = vadd.f32 %v253, %v573
    %v575 = vpop.f32.mrb[0].mxu0
    %576 = vmatprep.mubr.f32.mxu0 0.0
    %577 = vmatmul.mubr.f32.gmra.mrb[0].mxu0 %v373
    %v578 = vpop.f32.mrb[0].mxu0
    %v579 = vadd.f32 %v258, %v578
    %v580 = vpop.f32.mrb[0].mxu0
    %581 = vmatprep.mubr.f32.mxu0 0.0
    %582 = vmatmul.mubr.f32.gmra.mrb[0].mxu0 %v376
    %v583 = vpop.f32.mrb[0].mxu0
    %v584 = vadd.f32 %v263, %v583
    %v585 = vpop.f32.mrb[0].mxu0
    %586 = vmatprep.mubr.f32.mxu0 0.0
    %587 = vmatmul.mubr.f32.gmra.mrb[0].mxu0 %v379
    %v588 = vpop.f32.mrb[0].mxu0
    %v589 = vadd.f32 %v268, %v588
    %v590 = vpop.f32.mrb[0].mxu0
    %591 = vmatprep.mubr.f32.mxu0 0.0
    %592 = vmatmul.mubr.f32.gmra.mrb[0].mxu0 %v382
    %v593 = vpop.f32.mrb[0].mxu0
    %v594 = vadd.f32 %v273, %v593
    %v595 = vpop.f32.mrb[0].mxu0
    %596 = vmatprep.mubr.f32.mxu0 0.0
    %597 = vmatmul.mubr.f32.gmra.mrb[0].mxu0 %v385
    %v598 = vpop.f32.mrb[0].mxu0
    %v599 = vadd.f32 %v278, %v598
    %v600 = vpop.f32.mrb[0].mxu0
    %601 = vmatprep.mubr.f32.mxu0 0.0
    %602 = vmatmul.mubr.f32.gmra.mrb[0].mxu0 %v388
    %v603 = vpop.f32.mrb[0].mxu0
    %v604 = vadd.f32 %v283, %v603
    %v605 = vpop.f32.mrb[0].mxu0
    %606 = vmatprep.mubr.f32.mxu0 0.0
    %607 = vmatmul.mubr.f32.gmra.mrb[0].mxu0 %v391
    %v608 = vpop.f32.mrb[0].mxu0
    %v609 = vadd.f32 %v288, %v608
    %v610 = vpop.f32.mrb[0].mxu0
    %611 = vmatprep.mubr.f32.mxu0 0.0
    %612 = vmatmul.mubr.f32.gmra.mrb[0].mxu0 %v394
    %v613 = vpop.f32.mrb[0].mxu0
    %v614 = vadd.f32 %v293, %v613
    %v615 = vpop.f32.mrb[0].mxu0
    %616 = vmatprep.mubr.f32.mxu0 0.0
    %617 = vmatmul.mubr.f32.gmra.mrb[0].mxu0 %v397
    %v618 = vpop.f32.mrb[0].mxu0
    %v619 = vadd.f32 %v298, %v618
    %v620 = vpop.f32.mrb[0].mxu0
    %621 = vmatprep.mubr.f32.mxu0 0.0
    %622 = vmatmul.mubr.f32.gmra.mrb[0].mxu0 %v400
    %v623 = vpop.f32.mrb[0].mxu0
    %v624 = vadd.f32 %v303, %v623
    %v625 = vpop.f32.mrb[0].mxu0
    %626 = vdwg.mxu0
    %v627 = vmax.f32 %v469, 0.0
    %v628 = vmax.f32 %v474, 0.0
    %v629 = vmax.f32 %v479, 0.0
    %v630 = vmax.f32 %v484, 0.0
    %v631 = vmax.f32 %v489, 0.0
    %v632 = vmax.f32 %v494, 0.0
    %v633 = vmax.f32 %v499, 0.0
    %v634 = vmax.f32 %v504, 0.0
    %v635 = vmax.f32 %v509, 0.0
    %v636 = vmax.f32 %v514, 0.0
    %v637 = vmax.f32 %v519, 0.0
    %v638 = vmax.f32 %v524, 0.0
    %v639 = vmax.f32 %v529, 0.0
    %v640 = vmax.f32 %v534, 0.0
    %v641 = vmax.f32 %v539, 0.0
    %v642 = vmax.f32 %v544, 0.0
    %v643 = vmax.f32 %v549, 0.0
    %v644 = vmax.f32 %v554, 0.0
    %v645 = vmax.f32 %v559, 0.0
    %v646 = vmax.f32 %v564, 0.0
    %v647 = vmax.f32 %v569, 0.0
    %v648 = vmax.f32 %v574, 0.0
    %v649 = vmax.f32 %v579, 0.0
    %v650 = vmax.f32 %v584, 0.0
    %v651 = vmax.f32 %v589, 0.0
    %v652 = vmax.f32 %v594, 0.0
    %v653 = vmax.f32 %v599, 0.0
    %v654 = vmax.f32 %v604, 0.0
    %v655 = vmax.f32 %v609, 0.0
    %v656 = vmax.f32 %v614, 0.0
    %v657 = vmax.f32 %v619, 0.0
    %v658 = vmax.f32 %v624, 0.0
    %v659 = vld [vmem:[%s5] sm:$0xff]
    %v660 = vld [vmem:[%s5 + $0x8] sm:$0xff]
    %v661 = vld [vmem:[%s5 + $0x10] sm:$0xff]
    %v662 = vld [vmem:[%s5 + $0x18] sm:$0xff]
    %v663 = vld [vmem:[%s5 + $0x20] sm:$0xff]
    %v664 = vld [vmem:[%s5 + $0x28] sm:$0xff]
    %v665 = vld [vmem:[%s6] sm:$0xff]
    %v666 = vld [vmem:[%s6 + $0x8] sm:$0xff]
    %v667 = vld [vmem:[%s6 + $0x10] sm:$0xff]
    %669 = vset.pattern.permute.xlu0 0
    %670 = vperm.xlu0 %669, %v665
    %v671 = vpop.permute.xlu0 %670
    %674 = vset.pattern.permute.xlu0 0
    %675 = vperm.xlu0 %674, %v666
    %v676 = vpop.permute.xlu0 %675
    %679 = vset.pattern.permute.xlu0 0
    %680 = vperm.xlu0 %679, %v667
    %v681 = vpop.permute.xlu0 %680
    %683 = vmatprep.subr.mxu0 0.0
    %684 = vmatpush1.msra.mxu0 %v627
    %685 = vmatprep.subr.mxu0 0.0
    %686 = vmatpush1.msra.mxu0 %v628
    %687 = vmatprep.subr.mxu0 0.0
    %688 = vmatpush1.msra.mxu0 %v629
    %689 = vmatprep.subr.mxu0 0.0
    %690 = vmatpush1.msra.mxu0 %v630
    %691 = vmatprep.subr.mxu0 0.0
    %692 = vmatpush1.msra.mxu0 %v631
    %693 = vmatprep.subr.mxu0 0.0
    %694 = vmatpush1.msra.mxu0 %v632
    %695 = vmatprep.subr.mxu0 0.0
    %696 = vmatpush1.msra.mxu0 %v633
    %697 = vmatprep.subr.mxu0 0.0
    %698 = vmatpush1.msra.mxu0 %v634
    %699 = vmatprep.subr.mxu0 0.0
    %700 = vmatpush1.msra.mxu0 %v635
    %701 = vmatprep.subr.mxu0 0.0
    %702 = vmatpush1.msra.mxu0 %v636
    %703 = vmatprep.subr.mxu0 0.0
    %704 = vmatpush1.msra.mxu0 %v637
    %705 = vmatprep.subr.mxu0 0.0
    %706 = vmatpush1.msra.mxu0 %v638
    %707 = vmatprep.subr.mxu0 0.0
    %708 = vmatpush1.msra.mxu0 %v639
    %709 = vmatprep.subr.mxu0 0.0
    %710 = vmatpush1.msra.mxu0 %v640
    %711 = vmatprep.subr.mxu0 0.0
    %712 = vmatpush1.msra.mxu0 %v641
    %713 = vmatprep.subr.mxu0 0.0
    %714 = vmatpush1.msra.mxu0 %v642
    %715 = vmatprep.subr.mxu0 0.0
    %716 = vmatpush1.msra.mxu0 %v643
    %717 = vmatprep.subr.mxu0 0.0
    %718 = vmatpush1.msra.mxu0 %v644
    %719 = vmatprep.subr.mxu0 0.0
    %720 = vmatpush1.msra.mxu0 %v645
    %721 = vmatprep.subr.mxu0 0.0
    %722 = vmatpush1.msra.mxu0 %v646
    %723 = vmatprep.subr.mxu0 0.0
    %724 = vmatpush1.msra.mxu0 %v647
    %725 = vmatprep.subr.mxu0 0.0
    %726 = vmatpush1.msra.mxu0 %v648
    %727 = vmatprep.subr.mxu0 0.0
    %728 = vmatpush1.msra.mxu0 %v649
    %729 = vmatprep.subr.mxu0 0.0
    %730 = vmatpush1.msra.mxu0 %v650
    %731 = vmatprep.subr.mxu0 0.0
    %732 = vmatpush1.msra.mxu0 %v651
    %733 = vmatprep.subr.mxu0 0.0
    %734 = vmatpush1.msra.mxu0 %v652
    %735 = vmatprep.subr.mxu0 0.0
    %736 = vmatpush1.msra.mxu0 %v653
    %737 = vmatprep.subr.mxu0 0.0
    %738 = vmatpush1.msra.mxu0 %v654
    %739 = vmatprep.subr.mxu0 0.0
    %740 = vmatpush1.msra.mxu0 %v655
    %741 = vmatprep.subr.mxu0 0.0
    %742 = vmatpush1.msra.mxu0 %v656
    %743 = vmatprep.subr.mxu0 0.0
    %744 = vmatpush1.msra.mxu0 %v657
    %745 = vmatprep.subr.mxu0 0.0
    %746 = vmatpush1.msra.mxu0 %v658
    %747 = vmatprep.mubr.f32.mxu0 %v660
    %748 = vmatmul.mubr.f32.gmra.mrb[0].mxu0 %v659
    %v749 = vpop.f32.mrb[0].mxu0
    %v750 = vadd.f32 %v671, %v749
    %v751 = vpop.f32.mrb[0].mxu0
    %752 = vmatprep.mubr.f32.mxu0 %v662
    %753 = vmatmul.mubr.f32.gmra.mrb[0].mxu0 %v661
    %v754 = vpop.f32.mrb[0].mxu0
    %v755 = vadd.f32 %v676, %v754
    %v756 = vpop.f32.mrb[0].mxu0
    %757 = vmatprep.mubr.f32.mxu0 %v664
    %758 = vmatmul.mubr.f32.gmra.mrb[0].mxu0 %v663
    %v759 = vpop.f32.mrb[0].mxu0
    %v760 = vadd.f32 %v681, %v759
    %v761 = vpop.f32.mrb[0].mxu0
    %762 = vdwg.mxu0
    %v763 = vmax.f32 %v750, 0.0
    %v764 = vmax.f32 %v755, 0.0
    %v765 = vmax.f32 %v760, 0.0
    %v766 = vpack.c.bf16 %v764, %v763
    %v767 = vpack.c.bf16 %v765, %v765
    %v783 = vunpack.c.l.b16 %v65
    %v784 = vunpack.c.l.b16 %v66
    %v785 = vunpack.c.l.b16 %v67
    %v786 = vunpack.c.l.b16 %v68
    %v787 = vunpack.c.l.b16 %v69
    %v788 = vunpack.c.l.b16 %v70
    %v789 = vunpack.c.l.b16 %v71
    %v790 = vunpack.c.l.b16 %v72
    %v791 = vunpack.c.l.b16 %v73
    %v792 = vunpack.c.l.b16 %v74
    %v793 = vunpack.c.l.b16 %v75
    %v794 = vunpack.c.l.b16 %v76
    %v795 = vunpack.c.l.b16 %v77
    %v796 = vunpack.c.l.b16 %v78
    %v797 = vunpack.c.l.b16 %v79
    %v798 = vpack.c.b16 %v784, %v783
    %v799 = vpack.c.b16 %v786, %v785
    %v800 = vpack.c.b16 %v788, %v787
    %v801 = vpack.c.b16 %v790, %v789
    %v802 = vpack.c.b16 %v792, %v791
    %v803 = vpack.c.b16 %v794, %v793
    %v804 = vpack.c.b16 %v796, %v795
    %v805 = vpack.c.b16 %v797, %v797
    %vm813 = vcmask 965632
    %v815 = vsel %vm813, %v766, 0
    %v818 = vsel %vm813, %v767, 0
    %vm820 = vcmask 1042432
    %v822 = vsel %vm820, %v805, 0
    %824 = vmatprep.subr.bf16.mxu0 0
    %825 = vmatpush1.bf16.msra.mxu0 %v798
    %826 = vmatprep.subr.bf16.mxu0 0
    %827 = vmatpush1.bf16.msra.mxu0 %v799
    %828 = vmatprep.subr.bf16.mxu0 0
    %829 = vmatpush1.bf16.msra.mxu0 %v800
    %830 = vmatprep.subr.bf16.mxu0 0
    %831 = vmatpush1.bf16.msra.mxu0 %v801
    %832 = vmatprep.subr.bf16.mxu0 0
    %833 = vmatpush1.bf16.msra.mxu0 %v802
    %834 = vmatprep.subr.bf16.mxu0 0
    %835 = vmatpush1.bf16.msra.mxu0 %v803
    %836 = vmatprep.subr.bf16.mxu0 0
    %837 = vmatpush1.bf16.msra.mxu0 %v804
    %838 = vmatprep.subr.bf16.mxu0 0
    %839 = vmatpush1.bf16.msra.mxu0 %v822
    %840 = vmatprep.subr.bf16.mxu0 0
    %841 = vmatpush1.bf16.msra.mxu0 0
    %842 = vmatprep.subr.bf16.mxu0 0
    %843 = vmatpush1.bf16.msra.mxu0 0
    %844 = vmatprep.subr.bf16.mxu0 0
    %845 = vmatpush1.bf16.msra.mxu0 0
    %846 = vmatprep.subr.bf16.mxu0 0
    %847 = vmatpush1.bf16.msra.mxu0 0
    %848 = vmatprep.subr.bf16.mxu0 0
    %849 = vmatpush1.bf16.msra.mxu0 0
    %850 = vmatprep.subr.bf16.mxu0 0
    %851 = vmatpush1.bf16.msra.mxu0 0
    %852 = vmatprep.subr.bf16.mxu0 0
    %853 = vmatpush1.bf16.msra.mxu0 0
    %854 = vmatprep.subr.bf16.mxu0 0
    %855 = vmatpush1.bf16.msra.mxu0 0
    %856 = vmatprep.mubr.bf16.mxu0 0
    %857 = vmatmul.mubr.bf16.gmra.mrb[0].mxu0 %v815
    %v858 = vpop.f32.mrb[0].mxu0
    %v859 = vadd.f32 0.0, %v858
    %v860 = vpop.f32.mrb[0].mxu0
    %v861 = vpop.f32.mrb[0].mxu0
    %v862 = vadd.f32 0.0, %v861
    %v863 = vpop.f32.mrb[0].mxu0
    %864 = vmatprep.mubr.bf16.mxu0 0
    %865 = vmatmul.mubr.bf16.gmra.mrb[0].mxu0 %v818
    %v866 = vpop.f32.mrb[0].mxu0
    %v867 = vadd.f32 0.0, %v866
    %v868 = vpop.f32.mrb[0].mxu0
    %v869 = vpop.f32.mrb[0].mxu0
    %v870 = vpop.f32.mrb[0].mxu0
    %871 = vdwg.mxu0
    %v873 = vlaneseq
    %v874 = vshrl.u32 %v873, 7
    %v875 = vsub.s32 0, %v874
    %v876 = vrot.slane %v80, %v875
    %v878 = vmul.f32 %v876, %v859
    %v879 = vmul.f32 %v876, %v862
    %v880 = vmul.f32 %v876, %v867
    %v881 = vld [vmem:[%s7] sm:$0xff]
    %v882 = vld [vmem:[%s7 + $0x8] sm:$0xff]
    %v883 = vld [vmem:[%s7 + $0x10] sm:$0xff]
    %v884 = vld [vmem:[%s8] sm:$0xff]
    %v885 = vld [vmem:[%s8 + $0x8] sm:$0xff]
    %v886 = vld [vmem:[%s8 + $0x10] sm:$0xff]
    %888 = vset.pattern.permute.xlu0 0
    %889 = vperm.xlu0 %888, %v884
    %v890 = vpop.permute.xlu0 %889
    %893 = vset.pattern.permute.xlu0 0
    %894 = vperm.xlu0 %893, %v885
    %v895 = vpop.permute.xlu0 %894
    %898 = vset.pattern.permute.xlu0 0
    %899 = vperm.xlu0 %898, %v886
    %v900 = vpop.permute.xlu0 %899
    %vm902 = vcmask 392192
    %v904 = vsel %vm902, %v881, 0
    %v907 = vsel %vm902, %v882, 0
    %v910 = vsel %vm902, %v883, 0
    %912 = vmatprep.subr.mxu0 0.0
    %913 = vmatpush1.msra.mxu0 %v878
    %914 = vmatprep.subr.mxu0 0.0
    %915 = vmatpush1.msra.mxu0 %v879
    %916 = vmatprep.subr.mxu0 0.0
    %917 = vmatpush1.msra.mxu0 %v880
    %918 = vmatprep.subr.mxu0 0.0
    %919 = vmatpush1.msra.mxu0 %v763
    %920 = vmatprep.subr.mxu0 0.0
    %921 = vmatpush1.msra.mxu0 %v764
    %922 = vmatprep.subr.mxu0 0.0
    %923 = vmatpush1.msra.mxu0 %v765
    %924 = vmatprep.subr.mxu0 0.0
    %925 = vmatpush1.msra.mxu0 0.0
    %926 = vmatprep.subr.mxu0 0.0
    %927 = vmatpush1.msra.mxu0 0.0
    %928 = vmatprep.subr.mxu0 0.0
    %929 = vmatpush1.msra.mxu0 0.0
    %930 = vmatprep.subr.mxu0 0.0
    %931 = vmatpush1.msra.mxu0 0.0
    %932 = vmatprep.subr.mxu0 0.0
    %933 = vmatpush1.msra.mxu0 0.0
    %934 = vmatprep.subr.mxu0 0.0
    %935 = vmatpush1.msra.mxu0 0.0
    %936 = vmatprep.subr.mxu0 0.0
    %937 = vmatpush1.msra.mxu0 0.0
    %938 = vmatprep.subr.mxu0 0.0
    %939 = vmatpush1.msra.mxu0 0.0
    %940 = vmatprep.subr.mxu0 0.0
    %941 = vmatpush1.msra.mxu0 0.0
    %942 = vmatprep.subr.mxu0 0.0
    %943 = vmatpush1.msra.mxu0 0.0
    %944 = vmatprep.subr.mxu0 0.0
    %945 = vmatpush1.msra.mxu0 0.0
    %946 = vmatprep.subr.mxu0 0.0
    %947 = vmatpush1.msra.mxu0 0.0
    %948 = vmatprep.subr.mxu0 0.0
    %949 = vmatpush1.msra.mxu0 0.0
    %950 = vmatprep.subr.mxu0 0.0
    %951 = vmatpush1.msra.mxu0 0.0
    %952 = vmatprep.subr.mxu0 0.0
    %953 = vmatpush1.msra.mxu0 0.0
    %954 = vmatprep.subr.mxu0 0.0
    %955 = vmatpush1.msra.mxu0 0.0
    %956 = vmatprep.subr.mxu0 0.0
    %957 = vmatpush1.msra.mxu0 0.0
    %958 = vmatprep.subr.mxu0 0.0
    %959 = vmatpush1.msra.mxu0 0.0
    %960 = vmatprep.subr.mxu0 0.0
    %961 = vmatpush1.msra.mxu0 0.0
    %962 = vmatprep.subr.mxu0 0.0
    %963 = vmatpush1.msra.mxu0 0.0
    %964 = vmatprep.subr.mxu0 0.0
    %965 = vmatpush1.msra.mxu0 0.0
    %966 = vmatprep.subr.mxu0 0.0
    %967 = vmatpush1.msra.mxu0 0.0
    %968 = vmatprep.subr.mxu0 0.0
    %969 = vmatpush1.msra.mxu0 0.0
    %970 = vmatprep.subr.mxu0 0.0
    %971 = vmatpush1.msra.mxu0 0.0
    %972 = vmatprep.subr.mxu0 0.0
    %973 = vmatpush1.msra.mxu0 0.0
    %974 = vmatprep.subr.mxu0 0.0
    %975 = vmatpush1.msra.mxu0 0.0
    %976 = vmatprep.mubr.f32.mxu0 0.0
    %977 = vmatmul.mubr.f32.gmra.mrb[0].mxu0 %v904
    %v978 = vpop.f32.mrb[0].mxu0
    %v979 = vadd.f32 %v890, %v978
    %v980 = vpop.f32.mrb[0].mxu0
    %981 = vmatprep.mubr.f32.mxu0 0.0
    %982 = vmatmul.mubr.f32.gmra.mrb[0].mxu0 %v907
    %v983 = vpop.f32.mrb[0].mxu0
    %v984 = vadd.f32 %v895, %v983
    %v985 = vpop.f32.mrb[0].mxu0
    %986 = vmatprep.mubr.f32.mxu0 0.0
    %987 = vmatmul.mubr.f32.gmra.mrb[0].mxu0 %v910
    %v988 = vpop.f32.mrb[0].mxu0
    %v989 = vadd.f32 %v900, %v988
    %v990 = vpop.f32.mrb[0].mxu0
    %991 = vdwg.mxu0
    %v992 = vmax.f32 %v979, 0.0
    %v993 = vmax.f32 %v984, 0.0
    %v994 = vmax.f32 %v989, 0.0
    %v995 = vpack.c.bf16 %v993, %v992
    %v996 = vpack.c.bf16 %v994, %v994
    %v998 = vsel %vm813, %v995, 0
    %v1001 = vsel %vm813, %v996, 0
    %1003 = vmatprep.subr.bf16.mxu0 0
    %1004 = vmatpush1.bf16.msra.mxu0 %v798
    %1005 = vmatprep.subr.bf16.mxu0 0
    %1006 = vmatpush1.bf16.msra.mxu0 %v799
    %1007 = vmatprep.subr.bf16.mxu0 0
    %1008 = vmatpush1.bf16.msra.mxu0 %v800
    %1009 = vmatprep.subr.bf16.mxu0 0
    %1010 = vmatpush1.bf16.msra.mxu0 %v801
    %1011 = vmatprep.subr.bf16.mxu0 0
    %1012 = vmatpush1.bf16.msra.mxu0 %v802
    %1013 = vmatprep.subr.bf16.mxu0 0
    %1014 = vmatpush1.bf16.msra.mxu0 %v803
    %1015 = vmatprep.subr.bf16.mxu0 0
    %1016 = vmatpush1.bf16.msra.mxu0 %v804
    %1017 = vmatprep.subr.bf16.mxu0 0
    %1018 = vmatpush1.bf16.msra.mxu0 %v822
    %1019 = vmatprep.subr.bf16.mxu0 0
    %1020 = vmatpush1.bf16.msra.mxu0 0
    %1021 = vmatprep.subr.bf16.mxu0 0
    %1022 = vmatpush1.bf16.msra.mxu0 0
    %1023 = vmatprep.subr.bf16.mxu0 0
    %1024 = vmatpush1.bf16.msra.mxu0 0
    %1025 = vmatprep.subr.bf16.mxu0 0
    %1026 = vmatpush1.bf16.msra.mxu0 0
    %1027 = vmatprep.subr.bf16.mxu0 0
    %1028 = vmatpush1.bf16.msra.mxu0 0
    %1029 = vmatprep.subr.bf16.mxu0 0
    %1030 = vmatpush1.bf16.msra.mxu0 0
    %1031 = vmatprep.subr.bf16.mxu0 0
    %1032 = vmatpush1.bf16.msra.mxu0 0
    %1033 = vmatprep.subr.bf16.mxu0 0
    %1034 = vmatpush1.bf16.msra.mxu0 0
    %1035 = vmatprep.mubr.bf16.mxu0 0
    %1036 = vmatmul.mubr.bf16.gmra.mrb[0].mxu0 %v998
    %v1037 = vpop.f32.mrb[0].mxu0
    %v1038 = vadd.f32 0.0, %v1037
    %v1039 = vpop.f32.mrb[0].mxu0
    %v1040 = vpop.f32.mrb[0].mxu0
    %v1041 = vadd.f32 0.0, %v1040
    %v1042 = vpop.f32.mrb[0].mxu0
    %1043 = vmatprep.mubr.bf16.mxu0 0
    %1044 = vmatmul.mubr.bf16.gmra.mrb[0].mxu0 %v1001
    %v1045 = vpop.f32.mrb[0].mxu0
    %v1046 = vadd.f32 0.0, %v1045
    %v1047 = vpop.f32.mrb[0].mxu0
    %v1048 = vpop.f32.mrb[0].mxu0
    %v1049 = vpop.f32.mrb[0].mxu0
    %1050 = vdwg.mxu0
    %v1051 = vmul.f32 %v876, %v1038
    %v1052 = vmul.f32 %v876, %v1041
    %v1053 = vmul.f32 %v876, %v1046
    %s1054 = scalar_lea.vmem %s7, 24
    %v1055 = vld [vmem:[%s1054] sm:$0xff]
    %v1056 = vld [vmem:[%s1054 + $0x8] sm:$0xff]
    %v1057 = vld [vmem:[%s1054 + $0x10] sm:$0xff]
    %s1058 = scalar_lea.vmem %s8, 24
    %v1059 = vld [vmem:[%s1058] sm:$0xff]
    %v1060 = vld [vmem:[%s1058 + $0x8] sm:$0xff]
    %v1061 = vld [vmem:[%s1058 + $0x10] sm:$0xff]
    %1063 = vset.pattern.permute.xlu0 0
    %1064 = vperm.xlu0 %1063, %v1059
    %v1065 = vpop.permute.xlu0 %1064
    %1068 = vset.pattern.permute.xlu0 0
    %1069 = vperm.xlu0 %1068, %v1060
    %v1070 = vpop.permute.xlu0 %1069
    %1073 = vset.pattern.permute.xlu0 0
    %1074 = vperm.xlu0 %1073, %v1061
    %v1075 = vpop.permute.xlu0 %1074
    %v1078 = vsel %vm902, %v1055, 0
    %v1081 = vsel %vm902, %v1056, 0
    %v1084 = vsel %vm902, %v1057, 0
    %1086 = vmatprep.subr.mxu0 0.0
    %1087 = vmatpush1.msra.mxu0 %v1051
    %1088 = vmatprep.subr.mxu0 0.0
    %1089 = vmatpush1.msra.mxu0 %v1052
    %1090 = vmatprep.subr.mxu0 0.0
    %1091 = vmatpush1.msra.mxu0 %v1053
    %1092 = vmatprep.subr.mxu0 0.0
    %1093 = vmatpush1.msra.mxu0 %v992
    %1094 = vmatprep.subr.mxu0 0.0
    %1095 = vmatpush1.msra.mxu0 %v993
    %1096 = vmatprep.subr.mxu0 0.0
    %1097 = vmatpush1.msra.mxu0 %v994
    %1098 = vmatprep.subr.mxu0 0.0
    %1099 = vmatpush1.msra.mxu0 0.0
    %1100 = vmatprep.subr.mxu0 0.0
    %1101 = vmatpush1.msra.mxu0 0.0
    %1102 = vmatprep.subr.mxu0 0.0
    %1103 = vmatpush1.msra.mxu0 0.0
    %1104 = vmatprep.subr.mxu0 0.0
    %1105 = vmatpush1.msra.mxu0 0.0
    %1106 = vmatprep.subr.mxu0 0.0
    %1107 = vmatpush1.msra.mxu0 0.0
    %1108 = vmatprep.subr.mxu0 0.0
    %1109 = vmatpush1.msra.mxu0 0.0
    %1110 = vmatprep.subr.mxu0 0.0
    %1111 = vmatpush1.msra.mxu0 0.0
    %1112 = vmatprep.subr.mxu0 0.0
    %1113 = vmatpush1.msra.mxu0 0.0
    %1114 = vmatprep.subr.mxu0 0.0
    %1115 = vmatpush1.msra.mxu0 0.0
    %1116 = vmatprep.subr.mxu0 0.0
    %1117 = vmatpush1.msra.mxu0 0.0
    %1118 = vmatprep.subr.mxu0 0.0
    %1119 = vmatpush1.msra.mxu0 0.0
    %1120 = vmatprep.subr.mxu0 0.0
    %1121 = vmatpush1.msra.mxu0 0.0
    %1122 = vmatprep.subr.mxu0 0.0
    %1123 = vmatpush1.msra.mxu0 0.0
    %1124 = vmatprep.subr.mxu0 0.0
    %1125 = vmatpush1.msra.mxu0 0.0
    %1126 = vmatprep.subr.mxu0 0.0
    %1127 = vmatpush1.msra.mxu0 0.0
    %1128 = vmatprep.subr.mxu0 0.0
    %1129 = vmatpush1.msra.mxu0 0.0
    %1130 = vmatprep.subr.mxu0 0.0
    %1131 = vmatpush1.msra.mxu0 0.0
    %1132 = vmatprep.subr.mxu0 0.0
    %1133 = vmatpush1.msra.mxu0 0.0
    %1134 = vmatprep.subr.mxu0 0.0
    %1135 = vmatpush1.msra.mxu0 0.0
    %1136 = vmatprep.subr.mxu0 0.0
    %1137 = vmatpush1.msra.mxu0 0.0
    %1138 = vmatprep.subr.mxu0 0.0
    %1139 = vmatpush1.msra.mxu0 0.0
    %1140 = vmatprep.subr.mxu0 0.0
    %1141 = vmatpush1.msra.mxu0 0.0
    %1142 = vmatprep.subr.mxu0 0.0
    %1143 = vmatpush1.msra.mxu0 0.0
    %1144 = vmatprep.subr.mxu0 0.0
    %1145 = vmatpush1.msra.mxu0 0.0
    %1146 = vmatprep.subr.mxu0 0.0
    %1147 = vmatpush1.msra.mxu0 0.0
    %1148 = vmatprep.subr.mxu0 0.0
    %1149 = vmatpush1.msra.mxu0 0.0
    %1150 = vmatprep.mubr.f32.mxu0 0.0
    %1151 = vmatmul.mubr.f32.gmra.mrb[0].mxu0 %v1078
    %v1152 = vpop.f32.mrb[0].mxu0
    %v1153 = vadd.f32 %v1065, %v1152
    %v1154 = vpop.f32.mrb[0].mxu0
    %1155 = vmatprep.mubr.f32.mxu0 0.0
    %1156 = vmatmul.mubr.f32.gmra.mrb[0].mxu0 %v1081
    %v1157 = vpop.f32.mrb[0].mxu0
    %v1158 = vadd.f32 %v1070, %v1157
    %v1159 = vpop.f32.mrb[0].mxu0
    %1160 = vmatprep.mubr.f32.mxu0 0.0
    %1161 = vmatmul.mubr.f32.gmra.mrb[0].mxu0 %v1084
    %v1162 = vpop.f32.mrb[0].mxu0
    %v1163 = vadd.f32 %v1075, %v1162
    %v1164 = vpop.f32.mrb[0].mxu0
    %1165 = vdwg.mxu0
    %v1166 = vmax.f32 %v1153, 0.0
    %v1167 = vmax.f32 %v1158, 0.0
    %v1168 = vmax.f32 %v1163, 0.0
    %v1169 = vpack.c.bf16 %v1167, %v1166
    %v1170 = vpack.c.bf16 %v1168, %v1168
    %v1172 = vsel %vm813, %v1169, 0
    %v1175 = vsel %vm813, %v1170, 0
    %1177 = vmatprep.subr.bf16.mxu0 0
    %1178 = vmatpush1.bf16.msra.mxu0 %v798
    %1179 = vmatprep.subr.bf16.mxu0 0
    %1180 = vmatpush1.bf16.msra.mxu0 %v799
    %1181 = vmatprep.subr.bf16.mxu0 0
    %1182 = vmatpush1.bf16.msra.mxu0 %v800
    %1183 = vmatprep.subr.bf16.mxu0 0
    %1184 = vmatpush1.bf16.msra.mxu0 %v801
    %1185 = vmatprep.subr.bf16.mxu0 0
    %1186 = vmatpush1.bf16.msra.mxu0 %v802
    %1187 = vmatprep.subr.bf16.mxu0 0
    %1188 = vmatpush1.bf16.msra.mxu0 %v803
    %1189 = vmatprep.subr.bf16.mxu0 0
    %1190 = vmatpush1.bf16.msra.mxu0 %v804
    %1191 = vmatprep.subr.bf16.mxu0 0
    %1192 = vmatpush1.bf16.msra.mxu0 %v822
    %1193 = vmatprep.subr.bf16.mxu0 0
    %1194 = vmatpush1.bf16.msra.mxu0 0
    %1195 = vmatprep.subr.bf16.mxu0 0
    %1196 = vmatpush1.bf16.msra.mxu0 0
    %1197 = vmatprep.subr.bf16.mxu0 0
    %1198 = vmatpush1.bf16.msra.mxu0 0
    %1199 = vmatprep.subr.bf16.mxu0 0
    %1200 = vmatpush1.bf16.msra.mxu0 0
    %1201 = vmatprep.subr.bf16.mxu0 0
    %1202 = vmatpush1.bf16.msra.mxu0 0
    %1203 = vmatprep.subr.bf16.mxu0 0
    %1204 = vmatpush1.bf16.msra.mxu0 0
    %1205 = vmatprep.subr.bf16.mxu0 0
    %1206 = vmatpush1.bf16.msra.mxu0 0
    %1207 = vmatprep.subr.bf16.mxu0 0
    %1208 = vmatpush1.bf16.msra.mxu0 0
    %1209 = vmatprep.mubr.bf16.mxu0 0
    %1210 = vmatmul.mubr.bf16.gmra.mrb[0].mxu0 %v1172
    %v1211 = vpop.f32.mrb[0].mxu0
    %v1212 = vadd.f32 0.0, %v1211
    %v1213 = vpop.f32.mrb[0].mxu0
    %v1214 = vpop.f32.mrb[0].mxu0
    %v1215 = vadd.f32 0.0, %v1214
    %v1216 = vpop.f32.mrb[0].mxu0
    %1217 = vmatprep.mubr.bf16.mxu0 0
    %1218 = vmatmul.mubr.bf16.gmra.mrb[0].mxu0 %v1175
    %v1219 = vpop.f32.mrb[0].mxu0
    %v1220 = vadd.f32 0.0, %v1219
    %v1221 = vpop.f32.mrb[0].mxu0
    %v1222 = vpop.f32.mrb[0].mxu0
    %v1223 = vpop.f32.mrb[0].mxu0
    %1224 = vdwg.mxu0
    %v1225 = vmul.f32 %v876, %v1212
    %v1226 = vmul.f32 %v876, %v1215
    %v1227 = vmul.f32 %v876, %v1220
    %s1228 = scalar_lea.vmem %s7, 48
    %v1229 = vld [vmem:[%s1228] sm:$0xff]
    %v1230 = vld [vmem:[%s1228 + $0x8] sm:$0xff]
    %v1231 = vld [vmem:[%s1228 + $0x10] sm:$0xff]
    %s1232 = scalar_lea.vmem %s8, 48
    %v1233 = vld [vmem:[%s1232] sm:$0xff]
    %v1234 = vld [vmem:[%s1232 + $0x8] sm:$0xff]
    %v1235 = vld [vmem:[%s1232 + $0x10] sm:$0xff]
    %1237 = vset.pattern.permute.xlu0 0
    %1238 = vperm.xlu0 %1237, %v1233
    %v1239 = vpop.permute.xlu0 %1238
    %1242 = vset.pattern.permute.xlu0 0
    %1243 = vperm.xlu0 %1242, %v1234
    %v1244 = vpop.permute.xlu0 %1243
    %1247 = vset.pattern.permute.xlu0 0
    %1248 = vperm.xlu0 %1247, %v1235
    %v1249 = vpop.permute.xlu0 %1248
    %v1252 = vsel %vm902, %v1229, 0
    %v1255 = vsel %vm902, %v1230, 0
    %v1258 = vsel %vm902, %v1231, 0
    %1260 = vmatprep.subr.mxu0 0.0
    %1261 = vmatpush1.msra.mxu0 %v1225
    %1262 = vmatprep.subr.mxu0 0.0
    %1263 = vmatpush1.msra.mxu0 %v1226
    %1264 = vmatprep.subr.mxu0 0.0
    %1265 = vmatpush1.msra.mxu0 %v1227
    %1266 = vmatprep.subr.mxu0 0.0
    %1267 = vmatpush1.msra.mxu0 %v1166
    %1268 = vmatprep.subr.mxu0 0.0
    %1269 = vmatpush1.msra.mxu0 %v1167
    %1270 = vmatprep.subr.mxu0 0.0
    %1271 = vmatpush1.msra.mxu0 %v1168
    %1272 = vmatprep.subr.mxu0 0.0
    %1273 = vmatpush1.msra.mxu0 0.0
    %1274 = vmatprep.subr.mxu0 0.0
    %1275 = vmatpush1.msra.mxu0 0.0
    %1276 = vmatprep.subr.mxu0 0.0
    %1277 = vmatpush1.msra.mxu0 0.0
    %1278 = vmatprep.subr.mxu0 0.0
    %1279 = vmatpush1.msra.mxu0 0.0
    %1280 = vmatprep.subr.mxu0 0.0
    %1281 = vmatpush1.msra.mxu0 0.0
    %1282 = vmatprep.subr.mxu0 0.0
    %1283 = vmatpush1.msra.mxu0 0.0
    %1284 = vmatprep.subr.mxu0 0.0
    %1285 = vmatpush1.msra.mxu0 0.0
    %1286 = vmatprep.subr.mxu0 0.0
    %1287 = vmatpush1.msra.mxu0 0.0
    %1288 = vmatprep.subr.mxu0 0.0
    %1289 = vmatpush1.msra.mxu0 0.0
    %1290 = vmatprep.subr.mxu0 0.0
    %1291 = vmatpush1.msra.mxu0 0.0
    %1292 = vmatprep.subr.mxu0 0.0
    %1293 = vmatpush1.msra.mxu0 0.0
    %1294 = vmatprep.subr.mxu0 0.0
    %1295 = vmatpush1.msra.mxu0 0.0
    %1296 = vmatprep.subr.mxu0 0.0
    %1297 = vmatpush1.msra.mxu0 0.0
    %1298 = vmatprep.subr.mxu0 0.0
    %1299 = vmatpush1.msra.mxu0 0.0
    %1300 = vmatprep.subr.mxu0 0.0
    %1301 = vmatpush1.msra.mxu0 0.0
    %1302 = vmatprep.subr.mxu0 0.0
    %1303 = vmatpush1.msra.mxu0 0.0
    %1304 = vmatprep.subr.mxu0 0.0
    %1305 = vmatpush1.msra.mxu0 0.0
    %1306 = vmatprep.subr.mxu0 0.0
    %1307 = vmatpush1.msra.mxu0 0.0
    %1308 = vmatprep.subr.mxu0 0.0
    %1309 = vmatpush1.msra.mxu0 0.0
    %1310 = vmatprep.subr.mxu0 0.0
    %1311 = vmatpush1.msra.mxu0 0.0
    %1312 = vmatprep.subr.mxu0 0.0
    %1313 = vmatpush1.msra.mxu0 0.0
    %1314 = vmatprep.subr.mxu0 0.0
    %1315 = vmatpush1.msra.mxu0 0.0
    %1316 = vmatprep.subr.mxu0 0.0
    %1317 = vmatpush1.msra.mxu0 0.0
    %1318 = vmatprep.subr.mxu0 0.0
    %1319 = vmatpush1.msra.mxu0 0.0
    %1320 = vmatprep.subr.mxu0 0.0
    %1321 = vmatpush1.msra.mxu0 0.0
    %1322 = vmatprep.subr.mxu0 0.0
    %1323 = vmatpush1.msra.mxu0 0.0
    %1324 = vmatprep.mubr.f32.mxu0 0.0
    %1325 = vmatmul.mubr.f32.gmra.mrb[0].mxu0 %v1252
    %v1326 = vpop.f32.mrb[0].mxu0
    %v1327 = vadd.f32 %v1239, %v1326
    %v1328 = vpop.f32.mrb[0].mxu0
    %1329 = vmatprep.mubr.f32.mxu0 0.0
    %1330 = vmatmul.mubr.f32.gmra.mrb[0].mxu0 %v1255
    %v1331 = vpop.f32.mrb[0].mxu0
    %v1332 = vadd.f32 %v1244, %v1331
    %v1333 = vpop.f32.mrb[0].mxu0
    %1334 = vmatprep.mubr.f32.mxu0 0.0
    %1335 = vmatmul.mubr.f32.gmra.mrb[0].mxu0 %v1258
    %v1336 = vpop.f32.mrb[0].mxu0
    %v1337 = vadd.f32 %v1249, %v1336
    %v1338 = vpop.f32.mrb[0].mxu0
    %1339 = vdwg.mxu0
    %v1340 = vld [vmem:[%s9] sm:$0xff]
    %v1341 = vld [vmem:[%s9 + $0x8] sm:$0xff]
    %v1342 = vld [vmem:[%s9 + $0x10] sm:$0xff]
    %v1343 = vld [vmem:[%s9 + $0x18] sm:$0xff]
    %v1344 = vld [vmem:[%s9 + $0x20] sm:$0xff]
    %v1345 = vld [vmem:[%s9 + $0x28] sm:$0xff]
    %v1346 = vld [vmem:[%s9 + $0x30] sm:$0xff]
    %v1347 = vld [vmem:[%s9 + $0x38] sm:$0xff]
    %v1348 = vld [vmem:[%s9 + $0x40] sm:$0xff]
    %v1349 = vld [vmem:[%s9 + $0x48] sm:$0xff]
    %v1350 = vld [vmem:[%s9 + $0x50] sm:$0xff]
    %v1351 = vld [vmem:[%s9 + $0x58] sm:$0xff]
    %v1352 = vld [vmem:[%s9 + $0x60] sm:$0xff]
    %v1353 = vld [vmem:[%s9 + $0x68] sm:$0xff]
    %v1354 = vld [vmem:[%s9 + $0x70] sm:$0xff]
    %v1355 = vld [vmem:[%s9 + $0x78] sm:$0xff]
    %v1356 = vld [vmem:[%s10] sm:$0xff]
    %v1357 = vld [vmem:[%s10 + $0x8] sm:$0xff]
    %v1358 = vld [vmem:[%s10 + $0x10] sm:$0xff]
    %v1359 = vld [vmem:[%s10 + $0x18] sm:$0xff]
    %v1360 = vld [vmem:[%s10 + $0x20] sm:$0xff]
    %v1361 = vld [vmem:[%s10 + $0x28] sm:$0xff]
    %v1362 = vld [vmem:[%s10 + $0x30] sm:$0xff]
    %v1363 = vld [vmem:[%s10 + $0x38] sm:$0xff]
    %v1364 = vld [vmem:[%s10 + $0x40] sm:$0xff]
    %v1365 = vld [vmem:[%s10 + $0x48] sm:$0xff]
    %v1366 = vld [vmem:[%s10 + $0x50] sm:$0xff]
    %v1367 = vld [vmem:[%s10 + $0x58] sm:$0xff]
    %v1368 = vld [vmem:[%s10 + $0x60] sm:$0xff]
    %v1369 = vld [vmem:[%s10 + $0x68] sm:$0xff]
    %v1370 = vld [vmem:[%s10 + $0x70] sm:$0xff]
    %v1371 = vld [vmem:[%s10 + $0x78] sm:$0xff]
    %1373 = vset.pattern.permute.xlu0 0
    %1374 = vperm.xlu0 %1373, %v1356
    %v1375 = vpop.permute.xlu0 %1374
    %1378 = vset.pattern.permute.xlu0 0
    %1379 = vperm.xlu0 %1378, %v1357
    %v1380 = vpop.permute.xlu0 %1379
    %1383 = vset.pattern.permute.xlu0 0
    %1384 = vperm.xlu0 %1383, %v1358
    %v1385 = vpop.permute.xlu0 %1384
    %1388 = vset.pattern.permute.xlu0 0
    %1389 = vperm.xlu0 %1388, %v1359
    %v1390 = vpop.permute.xlu0 %1389
    %1393 = vset.pattern.permute.xlu0 0
    %1394 = vperm.xlu0 %1393, %v1360
    %v1395 = vpop.permute.xlu0 %1394
    %1398 = vset.pattern.permute.xlu0 0
    %1399 = vperm.xlu0 %1398, %v1361
    %v1400 = vpop.permute.xlu0 %1399
    %1403 = vset.pattern.permute.xlu0 0
    %1404 = vperm.xlu0 %1403, %v1362
    %v1405 = vpop.permute.xlu0 %1404
    %1408 = vset.pattern.permute.xlu0 0
    %1409 = vperm.xlu0 %1408, %v1363
    %v1410 = vpop.permute.xlu0 %1409
    %1413 = vset.pattern.permute.xlu0 0
    %1414 = vperm.xlu0 %1413, %v1364
    %v1415 = vpop.permute.xlu0 %1414
    %1418 = vset.pattern.permute.xlu0 0
    %1419 = vperm.xlu0 %1418, %v1365
    %v1420 = vpop.permute.xlu0 %1419
    %1423 = vset.pattern.permute.xlu0 0
    %1424 = vperm.xlu0 %1423, %v1366
    %v1425 = vpop.permute.xlu0 %1424
    %1428 = vset.pattern.permute.xlu0 0
    %1429 = vperm.xlu0 %1428, %v1367
    %v1430 = vpop.permute.xlu0 %1429
    %1433 = vset.pattern.permute.xlu0 0
    %1434 = vperm.xlu0 %1433, %v1368
    %v1435 = vpop.permute.xlu0 %1434
    %1438 = vset.pattern.permute.xlu0 0
    %1439 = vperm.xlu0 %1438, %v1369
    %v1440 = vpop.permute.xlu0 %1439
    %1443 = vset.pattern.permute.xlu0 0
    %1444 = vperm.xlu0 %1443, %v1370
    %v1445 = vpop.permute.xlu0 %1444
    %1448 = vset.pattern.permute.xlu0 0
    %1449 = vperm.xlu0 %1448, %v1371
    %v1450 = vpop.permute.xlu0 %1449
    %vm1452 = vcmask 195584
    %v1454 = vsel %vm1452, %v1340, 0
    %v1457 = vsel %vm1452, %v1341, 0
    %v1460 = vsel %vm1452, %v1342, 0
    %v1463 = vsel %vm1452, %v1343, 0
    %v1466 = vsel %vm1452, %v1344, 0
    %v1469 = vsel %vm1452, %v1345, 0
    %v1472 = vsel %vm1452, %v1346, 0
    %v1475 = vsel %vm1452, %v1347, 0
    %v1478 = vsel %vm1452, %v1348, 0
    %v1481 = vsel %vm1452, %v1349, 0
    %v1484 = vsel %vm1452, %v1350, 0
    %v1487 = vsel %vm1452, %v1351, 0
    %v1490 = vsel %vm1452, %v1352, 0
    %v1493 = vsel %vm1452, %v1353, 0
    %v1496 = vsel %vm1452, %v1354, 0
    %v1499 = vsel %vm1452, %v1355, 0
    %1501 = vmatprep.subr.mxu0 0.0
    %1502 = vmatpush1.msra.mxu0 %v1327
    %1503 = vmatprep.subr.mxu0 0.0
    %1504 = vmatpush1.msra.mxu0 %v1332
    %1505 = vmatprep.subr.mxu0 0.0
    %1506 = vmatpush1.msra.mxu0 %v1337
    %1507 = vmatprep.subr.mxu0 0.0
    %1508 = vmatpush1.msra.mxu0 0.0
    %1509 = vmatprep.subr.mxu0 0.0
    %1510 = vmatpush1.msra.mxu0 0.0
    %1511 = vmatprep.subr.mxu0 0.0
    %1512 = vmatpush1.msra.mxu0 0.0
    %1513 = vmatprep.subr.mxu0 0.0
    %1514 = vmatpush1.msra.mxu0 0.0
    %1515 = vmatprep.subr.mxu0 0.0
    %1516 = vmatpush1.msra.mxu0 0.0
    %1517 = vmatprep.subr.mxu0 0.0
    %1518 = vmatpush1.msra.mxu0 0.0
    %1519 = vmatprep.subr.mxu0 0.0
    %1520 = vmatpush1.msra.mxu0 0.0
    %1521 = vmatprep.subr.mxu0 0.0
    %1522 = vmatpush1.msra.mxu0 0.0
    %1523 = vmatprep.subr.mxu0 0.0
    %1524 = vmatpush1.msra.mxu0 0.0
    %1525 = vmatprep.subr.mxu0 0.0
    %1526 = vmatpush1.msra.mxu0 0.0
    %1527 = vmatprep.subr.mxu0 0.0
    %1528 = vmatpush1.msra.mxu0 0.0
    %1529 = vmatprep.subr.mxu0 0.0
    %1530 = vmatpush1.msra.mxu0 0.0
    %1531 = vmatprep.subr.mxu0 0.0
    %1532 = vmatpush1.msra.mxu0 0.0
    %1533 = vmatprep.subr.mxu0 0.0
    %1534 = vmatpush1.msra.mxu0 0.0
    %1535 = vmatprep.subr.mxu0 0.0
    %1536 = vmatpush1.msra.mxu0 0.0
    %1537 = vmatprep.subr.mxu0 0.0
    %1538 = vmatpush1.msra.mxu0 0.0
    %1539 = vmatprep.subr.mxu0 0.0
    %1540 = vmatpush1.msra.mxu0 0.0
    %1541 = vmatprep.subr.mxu0 0.0
    %1542 = vmatpush1.msra.mxu0 0.0
    %1543 = vmatprep.subr.mxu0 0.0
    %1544 = vmatpush1.msra.mxu0 0.0
    %1545 = vmatprep.subr.mxu0 0.0
    %1546 = vmatpush1.msra.mxu0 0.0
    %1547 = vmatprep.subr.mxu0 0.0
    %1548 = vmatpush1.msra.mxu0 0.0
    %1549 = vmatprep.subr.mxu0 0.0
    %1550 = vmatpush1.msra.mxu0 0.0
    %1551 = vmatprep.subr.mxu0 0.0
    %1552 = vmatpush1.msra.mxu0 0.0
    %1553 = vmatprep.subr.mxu0 0.0
    %1554 = vmatpush1.msra.mxu0 0.0
    %1555 = vmatprep.subr.mxu0 0.0
    %1556 = vmatpush1.msra.mxu0 0.0
    %1557 = vmatprep.subr.mxu0 0.0
    %1558 = vmatpush1.msra.mxu0 0.0
    %1559 = vmatprep.subr.mxu0 0.0
    %1560 = vmatpush1.msra.mxu0 0.0
    %1561 = vmatprep.subr.mxu0 0.0
    %1562 = vmatpush1.msra.mxu0 0.0
    %1563 = vmatprep.subr.mxu0 0.0
    %1564 = vmatpush1.msra.mxu0 0.0
    %1565 = vmatprep.mubr.f32.mxu0 0.0
    %1566 = vmatmul.mubr.f32.gmra.mrb[0].mxu0 %v1454
    %v1567 = vpop.f32.mrb[0].mxu0
    %v1568 = vadd.f32 %v1375, %v1567
    %v1569 = vpop.f32.mrb[0].mxu0
    %1570 = vmatprep.mubr.f32.mxu0 0.0
    %1571 = vmatmul.mubr.f32.gmra.mrb[0].mxu0 %v1457
    %v1572 = vpop.f32.mrb[0].mxu0
    %v1573 = vadd.f32 %v1380, %v1572
    %v1574 = vpop.f32.mrb[0].mxu0
    %1575 = vmatprep.mubr.f32.mxu0 0.0
    %1576 = vmatmul.mubr.f32.gmra.mrb[0].mxu0 %v1460
    %v1577 = vpop.f32.mrb[0].mxu0
    %v1578 = vadd.f32 %v1385, %v1577
    %v1579 = vpop.f32.mrb[0].mxu0
    %1580 = vmatprep.mubr.f32.mxu0 0.0
    %1581 = vmatmul.mubr.f32.gmra.mrb[0].mxu0 %v1463
    %v1582 = vpop.f32.mrb[0].mxu0
    %v1583 = vadd.f32 %v1390, %v1582
    %v1584 = vpop.f32.mrb[0].mxu0
    %1585 = vmatprep.mubr.f32.mxu0 0.0
    %1586 = vmatmul.mubr.f32.gmra.mrb[0].mxu0 %v1466
    %v1587 = vpop.f32.mrb[0].mxu0
    %v1588 = vadd.f32 %v1395, %v1587
    %v1589 = vpop.f32.mrb[0].mxu0
    %1590 = vmatprep.mubr.f32.mxu0 0.0
    %1591 = vmatmul.mubr.f32.gmra.mrb[0].mxu0 %v1469
    %v1592 = vpop.f32.mrb[0].mxu0
    %v1593 = vadd.f32 %v1400, %v1592
    %v1594 = vpop.f32.mrb[0].mxu0
    %1595 = vmatprep.mubr.f32.mxu0 0.0
    %1596 = vmatmul.mubr.f32.gmra.mrb[0].mxu0 %v1472
    %v1597 = vpop.f32.mrb[0].mxu0
    %v1598 = vadd.f32 %v1405, %v1597
    %v1599 = vpop.f32.mrb[0].mxu0
    %1600 = vmatprep.mubr.f32.mxu0 0.0
    %1601 = vmatmul.mubr.f32.gmra.mrb[0].mxu0 %v1475
    %v1602 = vpop.f32.mrb[0].mxu0
    %v1603 = vadd.f32 %v1410, %v1602
    %v1604 = vpop.f32.mrb[0].mxu0
    %1605 = vmatprep.mubr.f32.mxu0 0.0
    %1606 = vmatmul.mubr.f32.gmra.mrb[0].mxu0 %v1478
    %v1607 = vpop.f32.mrb[0].mxu0
    %v1608 = vadd.f32 %v1415, %v1607
    %v1609 = vpop.f32.mrb[0].mxu0
    %1610 = vmatprep.mubr.f32.mxu0 0.0
    %1611 = vmatmul.mubr.f32.gmra.mrb[0].mxu0 %v1481
    %v1612 = vpop.f32.mrb[0].mxu0
    %v1613 = vadd.f32 %v1420, %v1612
    %v1614 = vpop.f32.mrb[0].mxu0
    %1615 = vmatprep.mubr.f32.mxu0 0.0
    %1616 = vmatmul.mubr.f32.gmra.mrb[0].mxu0 %v1484
    %v1617 = vpop.f32.mrb[0].mxu0
    %v1618 = vadd.f32 %v1425, %v1617
    %v1619 = vpop.f32.mrb[0].mxu0
    %1620 = vmatprep.mubr.f32.mxu0 0.0
    %1621 = vmatmul.mubr.f32.gmra.mrb[0].mxu0 %v1487
    %v1622 = vpop.f32.mrb[0].mxu0
    %v1623 = vadd.f32 %v1430, %v1622
    %v1624 = vpop.f32.mrb[0].mxu0
    %1625 = vmatprep.mubr.f32.mxu0 0.0
    %1626 = vmatmul.mubr.f32.gmra.mrb[0].mxu0 %v1490
    %v1627 = vpop.f32.mrb[0].mxu0
    %v1628 = vadd.f32 %v1435, %v1627
    %v1629 = vpop.f32.mrb[0].mxu0
    %1630 = vmatprep.mubr.f32.mxu0 0.0
    %1631 = vmatmul.mubr.f32.gmra.mrb[0].mxu0 %v1493
    %v1632 = vpop.f32.mrb[0].mxu0
    %v1633 = vadd.f32 %v1440, %v1632
    %v1634 = vpop.f32.mrb[0].mxu0
    %1635 = vmatprep.mubr.f32.mxu0 0.0
    %1636 = vmatmul.mubr.f32.gmra.mrb[0].mxu0 %v1496
    %v1637 = vpop.f32.mrb[0].mxu0
    %v1638 = vadd.f32 %v1445, %v1637
    %v1639 = vpop.f32.mrb[0].mxu0
    %1640 = vmatprep.mubr.f32.mxu0 0.0
    %1641 = vmatmul.mubr.f32.gmra.mrb[0].mxu0 %v1499
    %v1642 = vpop.f32.mrb[0].mxu0
    %v1643 = vadd.f32 %v1450, %v1642
    %v1644 = vpop.f32.mrb[0].mxu0
    %1645 = vdwg.mxu0
    %v1646 = vmax.f32 %v1568, 0.0
    %v1647 = vmax.f32 %v1573, 0.0
    %v1648 = vmax.f32 %v1578, 0.0
    %v1649 = vmax.f32 %v1583, 0.0
    %v1650 = vmax.f32 %v1588, 0.0
    %v1651 = vmax.f32 %v1593, 0.0
    %v1652 = vmax.f32 %v1598, 0.0
    %v1653 = vmax.f32 %v1603, 0.0
    %v1654 = vmax.f32 %v1608, 0.0
    %v1655 = vmax.f32 %v1613, 0.0
    %v1656 = vmax.f32 %v1618, 0.0
    %v1657 = vmax.f32 %v1623, 0.0
    %v1658 = vmax.f32 %v1628, 0.0
    %v1659 = vmax.f32 %v1633, 0.0
    %v1660 = vmax.f32 %v1638, 0.0
    %v1661 = vmax.f32 %v1643, 0.0
    %v1662 = vld [vmem:[%s11] sm:$0xff]
    %v1663 = vld [vmem:[%s11 + $0x8] sm:$0xf]
    %v1664 = vld [vmem:[%s12] sm:$0xff]
    %v1665 = vld [vmem:[%s12 + $0x8] sm:$0xf]
    %1667 = vset.pattern.permute.xlu0 0
    %1668 = vperm.xlu0 %1667, %v1664
    %v1669 = vpop.permute.xlu0 %1668
    %1672 = vset.pattern.permute.xlu0 0
    %1673 = vperm.xlu0 %1672, %v1665
    %v1674 = vpop.permute.xlu0 %1673
    %1676 = vmatprep.subr.mxu0 0.0
    %1677 = vmatpush1.msra.mxu0 %v1646
    %1678 = vmatprep.subr.mxu0 0.0
    %1679 = vmatpush1.msra.mxu0 %v1647
    %1680 = vmatprep.subr.mxu0 0.0
    %1681 = vmatpush1.msra.mxu0 %v1648
    %1682 = vmatprep.subr.mxu0 0.0
    %1683 = vmatpush1.msra.mxu0 %v1649
    %1684 = vmatprep.subr.mxu0 0.0
    %1685 = vmatpush1.msra.mxu0 %v1650
    %1686 = vmatprep.subr.mxu0 0.0
    %1687 = vmatpush1.msra.mxu0 %v1651
    %1688 = vmatprep.subr.mxu0 0.0
    %1689 = vmatpush1.msra.mxu0 %v1652
    %1690 = vmatprep.subr.mxu0 0.0
    %1691 = vmatpush1.msra.mxu0 %v1653
    %1692 = vmatprep.subr.mxu0 0.0
    %1693 = vmatpush1.msra.mxu0 %v1654
    %1694 = vmatprep.subr.mxu0 0.0
    %1695 = vmatpush1.msra.mxu0 %v1655
    %1696 = vmatprep.subr.mxu0 0.0
    %1697 = vmatpush1.msra.mxu0 %v1656
    %1698 = vmatprep.subr.mxu0 0.0
    %1699 = vmatpush1.msra.mxu0 %v1657
    %1700 = vmatprep.subr.mxu0 0.0
    %1701 = vmatpush1.msra.mxu0 %v1658
    %1702 = vmatprep.subr.mxu0 0.0
    %1703 = vmatpush1.msra.mxu0 %v1659
    %1704 = vmatprep.subr.mxu0 0.0
    %1705 = vmatpush1.msra.mxu0 %v1660
    %1706 = vmatprep.subr.mxu0 0.0
    %1707 = vmatpush1.msra.mxu0 %v1661
    %1708 = vmatprep.subr.mxu0 0.0
    %1709 = vmatpush1.msra.mxu0 0.0
    %1710 = vmatprep.subr.mxu0 0.0
    %1711 = vmatpush1.msra.mxu0 0.0
    %1712 = vmatprep.subr.mxu0 0.0
    %1713 = vmatpush1.msra.mxu0 0.0
    %1714 = vmatprep.subr.mxu0 0.0
    %1715 = vmatpush1.msra.mxu0 0.0
    %1716 = vmatprep.subr.mxu0 0.0
    %1717 = vmatpush1.msra.mxu0 0.0
    %1718 = vmatprep.subr.mxu0 0.0
    %1719 = vmatpush1.msra.mxu0 0.0
    %1720 = vmatprep.subr.mxu0 0.0
    %1721 = vmatpush1.msra.mxu0 0.0
    %1722 = vmatprep.subr.mxu0 0.0
    %1723 = vmatpush1.msra.mxu0 0.0
    %1724 = vmatprep.subr.mxu0 0.0
    %1725 = vmatpush1.msra.mxu0 0.0
    %1726 = vmatprep.subr.mxu0 0.0
    %1727 = vmatpush1.msra.mxu0 0.0
    %1728 = vmatprep.subr.mxu0 0.0
    %1729 = vmatpush1.msra.mxu0 0.0
    %1730 = vmatprep.subr.mxu0 0.0
    %1731 = vmatpush1.msra.mxu0 0.0
    %1732 = vmatprep.subr.mxu0 0.0
    %1733 = vmatpush1.msra.mxu0 0.0
    %1734 = vmatprep.subr.mxu0 0.0
    %1735 = vmatpush1.msra.mxu0 0.0
    %1736 = vmatprep.subr.mxu0 0.0
    %1737 = vmatpush1.msra.mxu0 0.0
    %1738 = vmatprep.subr.mxu0 0.0
    %1739 = vmatpush1.msra.mxu0 0.0
    %1740 = vmatprep.mubr.f32.mxu0 0.0
    %1741 = vmatmul.mubr.f32.gmra.mrb[0].mxu0 %v1662
    %v1742 = vpop.f32.mrb[0].mxu0
    %v1743 = vadd.f32 %v1669, %v1742
    %v1744 = vpop.f32.mrb[0].mxu0
    %1745 = vmatprep.mubr.f32.mxu0 0.0
    %1746 = vmatmul.mubr.f32.gmra.mrb[0].mxu0 %v1663
    %v1747 = vpop.f32.mrb[0].mxu0
    %v1748 = vadd.f32 %v1674, %v1747
    %v1749 = vpop.f32.mrb[0].mxu0
    %1750 = vdwg.mxu0
    %1751 = vst.msk [vmem:[#allocation2] sm:$0xff] %vm813, %v1743
    %vm1752 = vcmask 961536
    %1753 = vst.msk [vmem:[#allocation2 + $0x8] sm:$0xf] %vm1752, %v1748
    // Predicated region
    $region54: #{tpu_custom_call.1} parent=1 // pred_check
      _
    $region55: #{tpu_custom_call.1} parent=1 // pred_check_branch
      %1755 = sbr.rel (0) target = $region57
    $region56: #{tpu_custom_call.1} parent=1 // pred_region
      %s1757 = ssub.s32 256, 256
      %1758 = vsyncadd [#allocation3], %s1757
      %s1759 = sshll.u32 [#allocation2], 4
      %s1760 = int_to_ptr.vmem [resolvable:$true] %s1759
      %1765 = dma.vmem_to_hbm [thread:$0]  %s1760, 256, %s13, [#allocation3], 128, 128, 8
    $region57: #{tpu_custom_call.1} parent=1 // pred_fallthru
      _
    // Predicated region
    $region58: #{tpu_custom_call.1} parent=1 // pred_check
      _
    $region59: #{tpu_custom_call.1} parent=1 // pred_check_branch
      %1767 = sbr.rel (0) target = $region61
    $region60: #{tpu_custom_call.1} parent=1 // pred_region
      %1768 = dma.done [#allocation3], 256
    $region61: #{tpu_custom_call.1} parent=1 // pred_fallthru
      _
    %1769 = vsyncpa [#allocation3], 1

</llo_original>
